<compile_context>
chip_gen: v7x
topology: tpu7x:2x2x1
jax: 0.10.0
libtpu: 0.0.40
codegen_flags: <defaults>
</compile_context>

<pallas_src>
import functools

import jax
import jax.numpy as jnp
import numpy as np
from jax.experimental import pallas as pl
from jax.experimental.pallas import tpu as pltpu

LANES = 128


# ---------------------------------------------------------------------------
# Small helpers
# ---------------------------------------------------------------------------
def _round_up(x, m):
    return ((x + m - 1) // m) * m


def _pad2(a, rows, cols):
    return jnp.pad(a, ((0, rows - a.shape[0]), (0, cols - a.shape[1])))


def _vmem_capacity_bytes():
    """Per-core VMEM capacity; conservative (v7x) fallback if query fails."""
    try:
        return int(pltpu.get_tpu_info().vmem_capacity_bytes)
    except Exception:
        return 64 * 1024 * 1024


def _vmem_budget_bytes():
    # ~0.75 of physical VMEM, capped: ~96 MiB on v5e/v6e, ~48 MiB on v7x.
    return min(int(0.75 * _vmem_capacity_bytes()), 100 * 1024 * 1024)


# ---------------------------------------------------------------------------
# Kernels
# ---------------------------------------------------------------------------
def _gcn_block(adj_ref, h_ref, w_ref, b_ref):
    """relu((adj_rowblock @ H) @ W + b); bf16 MXU inputs, f32 accumulate."""
    ah = jnp.dot(adj_ref[...], h_ref[...], preferred_element_type=jnp.float32)
    z = jnp.dot(ah.astype(jnp.bfloat16), w_ref[...],
                preferred_element_type=jnp.float32) + b_ref[...]
    return jnp.maximum(z, 0.0)  # (tm, Fout) f32


def gcn_first_kernel(adj_ref, h_ref, w_ref, b_ref, h_out_ref, jk_out_ref):
    h_new = _gcn_block(adj_ref, h_ref, w_ref, b_ref)
    h_out_ref[...] = h_new.astype(h_out_ref.dtype)   # bf16 activations
    jk_out_ref[...] = h_new                           # f32 running JK max


def gcn_mid_kernel(adj_ref, h_ref, w_ref, b_ref, jk_ref, h_out_ref, jk_out_ref):
    h_new = _gcn_block(adj_ref, h_ref, w_ref, b_ref)
    h_out_ref[...] = h_new.astype(h_out_ref.dtype)
    jk_out_ref[...] = jnp.maximum(jk_ref[...], h_new)


def gcn_last_kernel(adj_ref, h_ref, w_ref, b_ref, jk_ref, jk_out_ref):
    h_new = _gcn_block(adj_ref, h_ref, w_ref, b_ref)
    jk_out_ref[...] = jnp.maximum(jk_ref[...], h_new)


def _make_fused_kernel(n_layers):
    """All layers in one kernel body: adjacency is loaded into VMEM once."""
    def kernel(*refs):
        adj_ref, x_ref = refs[0], refs[1]
        out_ref = refs[-1]
        adj = adj_ref[...]                       # bf16 (Np, Np), read ONCE
        h = x_ref[...]                           # bf16 (Np, Fin_p)
        jk = None
        for l in range(n_layers):                # static unroll over layers
            w = refs[2 + 2 * l][...]             # bf16 (Fin_p, Fout_p)
            b = refs[3 + 2 * l][...]             # f32  (1, Fout_p)
            ah = jnp.dot(adj, h, preferred_element_type=jnp.float32)
            z = jnp.dot(ah.astype(jnp.bfloat16), w,
                        preferred_element_type=jnp.float32) + b
            h_f32 = jnp.maximum(z, 0.0)
            jk = h_f32 if jk is None else jnp.maximum(jk, h_f32)
            h = h_f32.astype(jnp.bfloat16)
        out_ref[...] = jk
    return kernel


# ---------------------------------------------------------------------------
# Fused single-call path (adjacency resident in VMEM across all layers)
# ---------------------------------------------------------------------------
def _forward_fused(adj_norm, features, params, vmem_budget):
    N, in_feats = features.shape
    n_classes = params[-1][0].shape[1]
    n_layers = len(params)
    Np = _round_up(N, LANES)
    Fout_p = _round_up(params[-1][0].shape[1], LANES)

    adj_p = _pad2(adj_norm, Np, Np).astype(jnp.bfloat16)
    h0 = _pad2(features, Np, _round_up(in_feats, LANES)).astype(jnp.bfloat16)

    args = [adj_p, h0]
    flops = 0
    bytes_acc = 2 * Np * Np + 2 * Np * h0.shape[1] + 4 * Np * Fout_p
    fin_p = h0.shape[1]
    for w, b in params:
        fi, fo = w.shape
        fi_p, fo_p = _round_up(fi, LANES), _round_up(fo, LANES)
        args.append(_pad2(w, fi_p, fo_p).astype(jnp.bfloat16))
        args.append(_pad2(b.reshape(1, -1), 1, fo_p).astype(jnp.float32))
        flops += 2 * Np * Np * fin_p + 2 * Np * fin_p * fo_p
        bytes_acc += 2 * fi_p * fo_p + 4 * fo_p
        fin_p = fo_p

    out = pl.pallas_call(
        _make_fused_kernel(n_layers),
        out_shape=jax.ShapeDtypeStruct((Np, Fout_p), jnp.float32),
        compiler_params=pltpu.CompilerParams(vmem_limit_bytes=vmem_budget),
        cost_estimate=pl.CostEstimate(flops=flops, transcendentals=0,
                                      bytes_accessed=bytes_acc),
    )(*args)
    return out[:N, :n_classes]


# ---------------------------------------------------------------------------
# Row-tiled per-layer path (large-N fallback)
# ---------------------------------------------------------------------------
def _pick_tm(N, vmem_budget, fin_p, fout_p, tm_req):
    Np0 = _round_up(N, LANES)
    if tm_req is None:
        # bigger tiles on 128-MiB chips (v5e/v6e), smaller on 64-MiB v7x
        tm_req = 512 if vmem_budget > 64 * 1024 * 1024 else 256
    # keep >= 2 row tiles so v7x's second TensorCore gets work
    tm = min(tm_req, max(LANES, (Np0 // 2 // LANES) * LANES))
    tm = max(LANES, (tm // LANES) * LANES)

    def vmem_need(tm_):
        Np = _round_up(N, tm_)
        return (2 * 2 * tm_ * Np                 # adj row block, double-buffered bf16
                + 2 * Np * fin_p                 # full H, single-buffered bf16
                + 2 * fin_p * fout_p + 4 * fout_p
                + 2 * 10 * tm_ * fout_p)         # h_out/jk_in/jk_out blocks, dbl buf

    while tm > LANES and vmem_need(tm) > vmem_budget:
        tm -= LANES
    return tm


def _forward_tiled(adj_norm, features, params, vmem_budget, tm_req):
    N, in_feats = features.shape
    n_classes = params[-1][0].shape[1]
    n_layers = len(params)
    Fin0_p = _round_up(in_feats, LANES)
    Fout_p = _round_up(params[-1][0].shape[1], LANES)

    tm = _pick_tm(N, vmem_budget, max(Fin0_p, Fout_p), Fout_p, tm_req)
    Np = _round_up(N, tm)

    adj_p = _pad2(adj_norm, Np, Np).astype(jnp.bfloat16)
    h = _pad2(features, Np, Fin0_p).astype(jnp.bfloat16)

    params_p = []
    for w, b in params:
        fi, fo = w.shape
        w_p = _pad2(w, _round_up(fi, LANES), _round_up(fo, LANES)).astype(jnp.bfloat16)
        b_p = _pad2(b.reshape(1, -1), 1, _round_up(fo, LANES)).astype(jnp.float32)
        params_p.append((w_p, b_p))

    grid = (Np // tm,)
    resident = pl.Buffered(1)      # constant-index-map operands: no double buffer
    jk = None

    for li, (w_p, b_p) in enumerate(params_p):
        Fin_p, Fo_p = w_p.shape
        is_first = li == 0
        is_last = li == n_layers - 1

        row_spec = pl.BlockSpec((tm, Fo_p), lambda i: (i, 0))
        in_specs = [
            pl.BlockSpec((tm, Np), lambda i: (i, 0)),                 # adj stream
            pl.BlockSpec((Np, Fin_p), lambda i: (0, 0), pipeline_mode=resident),
            pl.BlockSpec((Fin_p, Fo_p), lambda i: (0, 0), pipeline_mode=resident),
            pl.BlockSpec((1, Fo_p), lambda i: (0, 0), pipeline_mode=resident),
        ]
        args = [adj_p, h, w_p, b_p]
        io_aliases = {}

        if is_first:
            kernel = gcn_first_kernel
        elif is_last:
            kernel = gcn_last_kernel
            in_specs.append(row_spec)
            args.append(jk)
            io_aliases = {4: 0}      # jk accumulator updated in place
        else:
            kernel = gcn_mid_kernel
            in_specs.append(row_spec)
            args.append(jk)
            io_aliases = {4: 1}      # jk accumulator updated in place

        jk_in_bytes = 0 if is_first else 4 * Np * Fo_p
        out_bytes = 4 * Np * Fo_p + (0 if is_last else 2 * Np * Fo_p)
        cost = pl.CostEstimate(
            flops=2 * Np * Np * Fin_p + 2 * Np * Fin_p * Fo_p,
            transcendentals=0,
            bytes_accessed=(2 * Np * Np + 2 * Np * Fin_p + 2 * Fin_p * Fo_p
                            + 4 * Fo_p + jk_in_bytes + out_bytes),
        )
        cparams = pltpu.CompilerParams(
            dimension_semantics=("parallel",),     # independent row tiles
            vmem_limit_bytes=vmem_budget,
        )

        if is_last and not is_first:
            out_shape = jax.ShapeDtypeStruct((Np, Fo_p), jnp.float32)
            out_specs = row_spec
        else:
            out_shape = (jax.ShapeDtypeStruct((Np, Fo_p), jnp.bfloat16),
                         jax.ShapeDtypeStruct((Np, Fo_p), jnp.float32))
            out_specs = (row_spec, row_spec)

        res = pl.pallas_call(
            kernel,
            out_shape=out_shape,
            grid=grid,
            in_specs=in_specs,
            out_specs=out_specs,
            input_output_aliases=io_aliases,
            compiler_params=cparams,
            cost_estimate=cost,
        )(*args)

        if is_last and not is_first:
            jk = res
        else:
            h, jk = res

    return jk[:N, :n_classes]


# ---------------------------------------------------------------------------
# Public wrapper
# ---------------------------------------------------------------------------
def jk_cflp_forward(adj_norm, features, params, *, tm=None, force_tiled=False):
    """JK_CFLP forward with Pallas TPU kernels.

    adj_norm : (N, N) f32 symmetric-normalized adjacency (self loops included)
    features : (N, in_feats) f32
    params   : list of (W, b), W (F_in, F_out), b (1, F_out)
    tm       : optional adjacency row tile for the tiled path (auto if None)
    """
    N, in_feats = features.shape
    widths = [w.shape[1] for (w, _) in params]
    if len(params) > 1:
        # JumpingKnowledge 'max' requires every layer output to share a width.
        assert len(set(widths)) == 1, "JK 'max' requires n_hidden == n_classes"

    vmem_budget = _vmem_budget_bytes()

    # Fused-path feasibility: whole padded problem + working set in VMEM.
    Np_f = _round_up(N, LANES)
    Fin_p = _round_up(in_feats, LANES)
    Fmax_p = max(Fin_p, max(_round_up(wd, LANES) for wd in widths))
    fused_bytes = (2 * Np_f * Np_f                       # bf16 adjacency
                   + 2 * Np_f * Fin_p                    # bf16 features
                   + sum(2 * _round_up(w.shape[0], LANES) * _round_up(w.shape[1], LANES)
                         + 4 * _round_up(w.shape[1], LANES) for (w, _) in params)
                   + 16 * Np_f * Fmax_p                  # live intermediates
                   + 4 * Np_f * _round_up(widths[-1], LANES))   # f32 output

    if (not force_tiled) and fused_bytes <= vmem_budget:
        return _forward_fused(adj_norm, features, params, vmem_budget)
    return _forward_tiled(adj_norm, features, params, vmem_budget, tm)


# ---------------------------------------------------------------------------
# References
# ---------------------------------------------------------------------------
def reference_forward_f32(adj_norm, features, params):
    """Exact module semantics in f32 (dense GraphConv stack + JK 'max')."""
    h = features
    jk = None
    for w, b in params:
        h = jnp.maximum(adj_norm @ h @ w + b, 0.0)
        jk = h if jk is None else jnp.maximum(jk, h)
    return jk


def reference_forward_bf16_matched(adj_norm, features, params):
    """Reference mirroring the kernel precision (bf16 MXU inputs, f32 accum)."""
    adj = adj_norm.astype(jnp.bfloat16)
    h = features.astype(jnp.bfloat16)
    jk = None
    for w, b in params:
        ah = jnp.dot(adj, h, preferred_element_type=jnp.float32)
        z = jnp.dot(ah.astype(jnp.bfloat16), w.astype(jnp.bfloat16),
                    preferred_element_type=jnp.float32) + b
        h_f32 = jnp.maximum(z, 0.0)
        jk = h_f32 if jk is None else jnp.maximum(jk, h_f32)
        h = h_f32.astype(jnp.bfloat16)
    return jk


def build_normalized_adj(key, n_nodes, edge_prob=0.1):
    # Random symmetric graph, add self loops (dgl.add_self_loop), then
    # symmetric normalization D^{-1/2} (A+I) D^{-1/2} (GraphConv norm='both').
    a = (jax.random.uniform(key, (n_nodes, n_nodes)) < edge_prob).astype(jnp.float32)
    a = jnp.maximum(a, a.T)                              # undirected
    a = a * (1.0 - jnp.eye(n_nodes, dtype=jnp.float32))  # clear diag
    a = a + jnp.eye(n_nodes, dtype=jnp.float32)          # add self loops
    deg = jnp.sum(a, axis=1)
    d_inv_sqrt = 1.0 / jnp.sqrt(deg)
    return a * d_inv_sqrt[:, None] * d_inv_sqrt[None, :]


if __name__ == "__main__":
    key = jax.random.PRNGKey(0)
    k_adj, k_x, k0, k1, k2, kb0, kb1, kb2 = jax.random.split(key, 8)

    # Small, module-consistent shapes; N=200 pads to 256.
    n_nodes = 200
    in_feats = 16
    n_hidden = 32
    n_classes = 32   # == n_hidden so JumpingKnowledge 'max' is well defined
    # n_layers = 3 -> GraphConv(in,hid), GraphConv(hid,hid), GraphConv(hid,cls)

    adj_norm = build_normalized_adj(k_adj, n_nodes)
    features = jax.random.normal(k_x, (n_nodes, in_feats), dtype=jnp.float32)

    def glorot(k, fan_in, fan_out):
        lim = float(np.sqrt(6.0 / (fan_in + fan_out)))
        return jax.random.uniform(k, (fan_in, fan_out), jnp.float32, -lim, lim)

    params = [
        (glorot(k0, in_feats, n_hidden),
         0.1 * jax.random.normal(kb0, (1, n_hidden), dtype=jnp.float32)),
        (glorot(k1, n_hidden, n_hidden),
         0.1 * jax.random.normal(kb1, (1, n_hidden), dtype=jnp.float32)),
        (glorot(k2, n_hidden, n_classes),
         0.1 * jax.random.normal(kb2, (1, n_classes), dtype=jnp.float32)),
    ]

    # Fused path (default at this size: adjacency resident in VMEM, one call).
    fwd_fused = jax.jit(jk_cflp_forward)
    out_fused = jax.block_until_ready(fwd_fused(adj_norm, features, params))
    assert out_fused.shape == (n_nodes, n_classes)

    # Tiled per-layer path (the large-N fallback), forced here to exercise it.
    fwd_tiled = jax.jit(functools.partial(jk_cflp_forward, force_tiled=True, tm=128))
    out_tiled = jax.block_until_ready(fwd_tiled(adj_norm, features, params))
    assert out_tiled.shape == (n_nodes, n_classes)

    # Tight check against a precision-matched reference (same bf16/f32 recipe).
    ref_bf16 = jax.block_until_ready(
        reference_forward_bf16_matched(adj_norm, features, params))
    for name, out in (("fused", out_fused), ("tiled", out_tiled)):
        err = float(np.max(np.abs(np.asarray(out) - np.asarray(ref_bf16))))
        assert np.allclose(np.asarray(out), np.asarray(ref_bf16),
                           rtol=1e-3, atol=1e-3), (name, err)

    # Loose sanity check against exact f32 module semantics (bf16 MXU inputs
    # are a deliberate, documented precision tradeoff).
    ref_f32 = jax.block_until_ready(reference_forward_f32(adj_norm, features, params))
    for name, out in (("fused", out_fused), ("tiled", out_tiled)):
        err = float(np.max(np.abs(np.asarray(out) - np.asarray(ref_f32))))
        assert np.allclose(np.asarray(out), np.asarray(ref_f32),
                           rtol=1e-1, atol=1e-1), (name, err)

    print("KERNEL_OK")
</pallas_src>

<mosaic_0001>
module attributes {stable_mosaic.version = 11 : i64} {
  func.func @kernel(%arg0: memref<256x256xbf16, #tpu.memory_space<vmem>>, %arg1: memref<256x128xbf16, #tpu.memory_space<vmem>>, %arg2: memref<128x128xbf16, #tpu.memory_space<vmem>>, %arg3: memref<1x128xf32, #tpu.memory_space<vmem>>, %arg4: memref<128x128xbf16, #tpu.memory_space<vmem>>, %arg5: memref<1x128xf32, #tpu.memory_space<vmem>>, %arg6: memref<128x128xbf16, #tpu.memory_space<vmem>>, %arg7: memref<1x128xf32, #tpu.memory_space<vmem>>, %arg8: memref<256x128xf32, #tpu.memory_space<vmem>>) attributes {dimension_semantics = [], scalar_prefetch = 0 : i64, scratch_operands = 0 : i64, tpu.core_type = #tpu.core_type<tc>} {
    %c0 = arith.constant 0 : index
    %c0_0 = arith.constant 0 : index
    %0 = vector.load %arg0[%c0, %c0_0] : memref<256x256xbf16, #tpu.memory_space<vmem>>, vector<256x256xbf16>
    %c0_1 = arith.constant 0 : index
    %c0_2 = arith.constant 0 : index
    %1 = vector.load %arg1[%c0_1, %c0_2] : memref<256x128xbf16, #tpu.memory_space<vmem>>, vector<256x128xbf16>
    %c0_3 = arith.constant 0 : index
    %c0_4 = arith.constant 0 : index
    %2 = vector.load %arg2[%c0_3, %c0_4] : memref<128x128xbf16, #tpu.memory_space<vmem>>, vector<128x128xbf16>
    %c0_5 = arith.constant 0 : index
    %c0_6 = arith.constant 0 : index
    %3 = vector.load %arg3[%c0_5, %c0_6] : memref<1x128xf32, #tpu.memory_space<vmem>>, vector<1x128xf32>
    %cst = arith.constant dense<0.000000e+00> : vector<256x128xf32>
    %4 = tpu.matmul %0, %1, %cst {dimension_numbers = #tpu.dot_dimension_numbers<[1], [0], [0], [1], [0, 0, 1, 1], [], []>} : vector<256x256xbf16>, vector<256x128xbf16>, vector<256x128xf32> -> vector<256x128xf32>
    %5 = arith.truncf %4 : vector<256x128xf32> to vector<256x128xbf16>
    %cst_7 = arith.constant dense<0.000000e+00> : vector<256x128xf32>
    %6 = tpu.matmul %5, %2, %cst_7 {dimension_numbers = #tpu.dot_dimension_numbers<[1], [0], [0], [1], [0, 0, 1, 1], [], []>} : vector<256x128xbf16>, vector<128x128xbf16>, vector<256x128xf32> -> vector<256x128xf32>
    %7 = vector.broadcast %3 : vector<1x128xf32> to vector<256x128xf32>
    %8 = arith.addf %6, %7 : vector<256x128xf32>
    %cst_8 = arith.constant 0.000000e+00 : f32
    %9 = vector.broadcast %cst_8 : f32 to vector<256x128xf32>
    %10 = arith.maximumf %8, %9 : vector<256x128xf32>
    %11 = arith.truncf %10 : vector<256x128xf32> to vector<256x128xbf16>
    %c0_9 = arith.constant 0 : index
    %c0_10 = arith.constant 0 : index
    %12 = vector.load %arg4[%c0_9, %c0_10] : memref<128x128xbf16, #tpu.memory_space<vmem>>, vector<128x128xbf16>
    %c0_11 = arith.constant 0 : index
    %c0_12 = arith.constant 0 : index
    %13 = vector.load %arg5[%c0_11, %c0_12] : memref<1x128xf32, #tpu.memory_space<vmem>>, vector<1x128xf32>
    %cst_13 = arith.constant dense<0.000000e+00> : vector<256x128xf32>
    %14 = tpu.matmul %0, %11, %cst_13 {dimension_numbers = #tpu.dot_dimension_numbers<[1], [0], [0], [1], [0, 0, 1, 1], [], []>} : vector<256x256xbf16>, vector<256x128xbf16>, vector<256x128xf32> -> vector<256x128xf32>
    %15 = arith.truncf %14 : vector<256x128xf32> to vector<256x128xbf16>
    %cst_14 = arith.constant dense<0.000000e+00> : vector<256x128xf32>
    %16 = tpu.matmul %15, %12, %cst_14 {dimension_numbers = #tpu.dot_dimension_numbers<[1], [0], [0], [1], [0, 0, 1, 1], [], []>} : vector<256x128xbf16>, vector<128x128xbf16>, vector<256x128xf32> -> vector<256x128xf32>
    %17 = vector.broadcast %13 : vector<1x128xf32> to vector<256x128xf32>
    %18 = arith.addf %16, %17 : vector<256x128xf32>
    %cst_15 = arith.constant 0.000000e+00 : f32
    %19 = vector.broadcast %cst_15 : f32 to vector<256x128xf32>
    %20 = arith.maximumf %18, %19 : vector<256x128xf32>
    %21 = arith.maximumf %10, %20 : vector<256x128xf32>
    %22 = arith.truncf %20 : vector<256x128xf32> to vector<256x128xbf16>
    %c0_16 = arith.constant 0 : index
    %c0_17 = arith.constant 0 : index
    %23 = vector.load %arg6[%c0_16, %c0_17] : memref<128x128xbf16, #tpu.memory_space<vmem>>, vector<128x128xbf16>
    %c0_18 = arith.constant 0 : index
    %c0_19 = arith.constant 0 : index
    %24 = vector.load %arg7[%c0_18, %c0_19] : memref<1x128xf32, #tpu.memory_space<vmem>>, vector<1x128xf32>
    %cst_20 = arith.constant dense<0.000000e+00> : vector<256x128xf32>
    %25 = tpu.matmul %0, %22, %cst_20 {dimension_numbers = #tpu.dot_dimension_numbers<[1], [0], [0], [1], [0, 0, 1, 1], [], []>} : vector<256x256xbf16>, vector<256x128xbf16>, vector<256x128xf32> -> vector<256x128xf32>
    %26 = arith.truncf %25 : vector<256x128xf32> to vector<256x128xbf16>
    %cst_21 = arith.constant dense<0.000000e+00> : vector<256x128xf32>
    %27 = tpu.matmul %26, %23, %cst_21 {dimension_numbers = #tpu.dot_dimension_numbers<[1], [0], [0], [1], [0, 0, 1, 1], [], []>} : vector<256x128xbf16>, vector<128x128xbf16>, vector<256x128xf32> -> vector<256x128xf32>
    %28 = vector.broadcast %24 : vector<1x128xf32> to vector<256x128xf32>
    %29 = arith.addf %27, %28 : vector<256x128xf32>
    %cst_22 = arith.constant 0.000000e+00 : f32
    %30 = vector.broadcast %cst_22 : f32 to vector<256x128xf32>
    %31 = arith.maximumf %29, %30 : vector<256x128xf32>
    %32 = arith.maximumf %21, %31 : vector<256x128xf32>
    %c0_23 = arith.constant 0 : index
    %c0_24 = arith.constant 0 : index
    %33 = vector.load %arg8[%c0_23, %c0_24] : memref<256x128xf32, #tpu.memory_space<vmem>>, vector<256x128xf32>
    tpu.vector_store %arg8[%c0_23, %c0_24], %32 {strides = array<i32>} : memref<256x128xf32, #tpu.memory_space<vmem>>, vector<256x128xf32>,
    return
  }
}

</mosaic_0001>

<llo_original>
// kernel: jk_cflp_forward.1
$region0: #{jk_cflp_forward.1}
  #allocation0 [shape = 'u32[]', space=smem, size = 0x4, offset = 0x4, fixed_abs, tag = 'smem constant byte address 0x4 - core index']
  #allocation1 [shape = 'u32[144,128]{1,0:T(1,128)}', space=vmem, size = 0x12000, scoped, tag = 'internal scratch']
  %s0 = inlined_call_operand.vmem [shape: bf16[256,256], index: 0, kind: input, shape index: {}]
  %s1 = inlined_call_operand.vmem [shape: bf16[256,128], index: 1, kind: input, shape index: {}]
  %s2 = inlined_call_operand.vmem [shape: bf16[128,128], index: 2, kind: input, shape index: {}]
  %s3 = inlined_call_operand.vmem [shape: f32[1,128], index: 3, kind: input, shape index: {}]
  %s4 = inlined_call_operand.vmem [shape: bf16[128,128], index: 4, kind: input, shape index: {}]
  %s5 = inlined_call_operand.vmem [shape: f32[1,128], index: 5, kind: input, shape index: {}]
  %s6 = inlined_call_operand.vmem [shape: bf16[128,128], index: 6, kind: input, shape index: {}]
  %s7 = inlined_call_operand.vmem [shape: f32[1,128], index: 7, kind: input, shape index: {}]
  %s8 = inlined_call_operand.vmem [shape: f32[256,128], index: 8, kind: output, shape index: {}]
  %s9 = sld [smem:[#allocation0]]
  $region42: #{jk_cflp_forward.1} parent=0
    _
  %s11 = ssub.s32 1, %s9
  %s12 = scalar_select 0, %s11, %s9
  // Predicated region
  $region2: #{jk_cflp_forward.1} parent=0 // pred_check
    _
  $region3: #{jk_cflp_forward.1} parent=0 // pred_check_branch
    %14 = sbr.rel (0) target = $region5
  $region4: #{jk_cflp_forward.1} parent=0 // pred_region
    _
  $region5: #{jk_cflp_forward.1} parent=0 // pred_fallthru
    _
  // Predicated region
  $region6: #{jk_cflp_forward.1} parent=0 // pred_check
    _
  $region7: #{jk_cflp_forward.1} parent=0 // pred_check_branch
    %16 = sbr.rel (0) target = $region9
  $region8: #{jk_cflp_forward.1} parent=0 // pred_region
    _
  $region9: #{jk_cflp_forward.1} parent=0 // pred_fallthru
    _
  // Predicated region
  $region10: #{jk_cflp_forward.1} parent=0 // pred_check
    _
  $region11: #{jk_cflp_forward.1} parent=0 // pred_check_branch
    %18 = sbr.rel (0) target = $region13
  $region12: #{jk_cflp_forward.1} parent=0 // pred_region
    _
  $region13: #{jk_cflp_forward.1} parent=0 // pred_fallthru
    _
  // Predicated region
  $region14: #{jk_cflp_forward.1} parent=0 // pred_check
    _
  $region15: #{jk_cflp_forward.1} parent=0 // pred_check_branch
    %20 = sbr.rel (0) target = $region17
  $region16: #{jk_cflp_forward.1} parent=0 // pred_region
    _
  $region17: #{jk_cflp_forward.1} parent=0 // pred_fallthru
    _
  // Predicated region
  $region18: #{jk_cflp_forward.1} parent=0 // pred_check
    _
  $region19: #{jk_cflp_forward.1} parent=0 // pred_check_branch
    %22 = sbr.rel (0) target = $region21
  $region20: #{jk_cflp_forward.1} parent=0 // pred_region
    _
  $region21: #{jk_cflp_forward.1} parent=0 // pred_fallthru
    _
  // Predicated region
  $region22: #{jk_cflp_forward.1} parent=0 // pred_check
    _
  $region23: #{jk_cflp_forward.1} parent=0 // pred_check_branch
    %24 = sbr.rel (0) target = $region25
  $region24: #{jk_cflp_forward.1} parent=0 // pred_region
    _
  $region25: #{jk_cflp_forward.1} parent=0 // pred_fallthru
    _
  // Predicated region
  $region26: #{jk_cflp_forward.1} parent=0 // pred_check
    _
  $region27: #{jk_cflp_forward.1} parent=0 // pred_check_branch
    %26 = sbr.rel (0) target = $region29
  $region28: #{jk_cflp_forward.1} parent=0 // pred_region
    _
  $region29: #{jk_cflp_forward.1} parent=0 // pred_fallthru
    _
  // Predicated region
  $region30: #{jk_cflp_forward.1} parent=0 // pred_check
    _
  $region31: #{jk_cflp_forward.1} parent=0 // pred_check_branch
    %28 = sbr.rel (0) target = $region33
  $region32: #{jk_cflp_forward.1} parent=0 // pred_region
    _
  $region33: #{jk_cflp_forward.1} parent=0 // pred_fallthru
    _
  %v30 = vld [vmem:[%s0] sm:$0xff]
  %v31 = vld [vmem:[%s0 + $0x8] sm:$0xff]
  %v32 = vld [vmem:[%s0 + $0x10] sm:$0xff]
  %v33 = vld [vmem:[%s0 + $0x18] sm:$0xff]
  %v34 = vld [vmem:[%s0 + $0x20] sm:$0xff]
  %v35 = vld [vmem:[%s0 + $0x28] sm:$0xff]
  %v36 = vld [vmem:[%s0 + $0x30] sm:$0xff]
  %v37 = vld [vmem:[%s0 + $0x38] sm:$0xff]
  %v38 = vld [vmem:[%s0 + $0x40] sm:$0xff]
  %v39 = vld [vmem:[%s0 + $0x48] sm:$0xff]
  %v40 = vld [vmem:[%s0 + $0x50] sm:$0xff]
  %v41 = vld [vmem:[%s0 + $0x58] sm:$0xff]
  %v42 = vld [vmem:[%s0 + $0x60] sm:$0xff]
  %v43 = vld [vmem:[%s0 + $0x68] sm:$0xff]
  %v44 = vld [vmem:[%s0 + $0x70] sm:$0xff]
  %v45 = vld [vmem:[%s0 + $0x78] sm:$0xff]
  %v46 = vld [vmem:[%s0 + $0x80] sm:$0xff]
  %v47 = vld [vmem:[%s0 + $0x88] sm:$0xff]
  %v48 = vld [vmem:[%s0 + $0x90] sm:$0xff]
  %v49 = vld [vmem:[%s0 + $0x98] sm:$0xff]
  %v50 = vld [vmem:[%s0 + $0xa0] sm:$0xff]
  %v51 = vld [vmem:[%s0 + $0xa8] sm:$0xff]
  %v52 = vld [vmem:[%s0 + $0xb0] sm:$0xff]
  %v53 = vld [vmem:[%s0 + $0xb8] sm:$0xff]
  %v54 = vld [vmem:[%s0 + $0xc0] sm:$0xff]
  %v55 = vld [vmem:[%s0 + $0xc8] sm:$0xff]
  %v56 = vld [vmem:[%s0 + $0xd0] sm:$0xff]
  %v57 = vld [vmem:[%s0 + $0xd8] sm:$0xff]
  %v58 = vld [vmem:[%s0 + $0xe0] sm:$0xff]
  %v59 = vld [vmem:[%s0 + $0xe8] sm:$0xff]
  %v60 = vld [vmem:[%s0 + $0xf0] sm:$0xff]
  %v61 = vld [vmem:[%s0 + $0xf8] sm:$0xff]
  %v62 = vld [vmem:[%s1] sm:$0xf]
  %v63 = vld [vmem:[%s1 + $0x4] sm:$0xf]
  %v64 = vld [vmem:[%s1 + $0x8] sm:$0xf]
  %v65 = vld [vmem:[%s1 + $0xc] sm:$0xf]
  %v66 = vld [vmem:[%s1 + $0x10] sm:$0xf]
  %v67 = vld [vmem:[%s1 + $0x14] sm:$0xf]
  %v68 = vld [vmem:[%s1 + $0x18] sm:$0xf]
  %v69 = vld [vmem:[%s1 + $0x1c] sm:$0xf]
  %v70 = vld [vmem:[%s1 + $0x20] sm:$0xf]
  %v71 = vld [vmem:[%s1 + $0x24] sm:$0xf]
  %v72 = vld [vmem:[%s1 + $0x28] sm:$0xf]
  %v73 = vld [vmem:[%s1 + $0x2c] sm:$0xf]
  %v74 = vld [vmem:[%s1 + $0x30] sm:$0xf]
  %v75 = vld [vmem:[%s1 + $0x34] sm:$0xf]
  %v76 = vld [vmem:[%s1 + $0x38] sm:$0xf]
  %v77 = vld [vmem:[%s1 + $0x3c] sm:$0xf]
  %v78 = vld [vmem:[%s1 + $0x40] sm:$0xf]
  %v79 = vld [vmem:[%s1 + $0x44] sm:$0xf]
  %v80 = vld [vmem:[%s1 + $0x48] sm:$0xf]
  %v81 = vld [vmem:[%s1 + $0x4c] sm:$0xf]
  %v82 = vld [vmem:[%s1 + $0x50] sm:$0xf]
  %v83 = vld [vmem:[%s1 + $0x54] sm:$0xf]
  %v84 = vld [vmem:[%s1 + $0x58] sm:$0xf]
  %v85 = vld [vmem:[%s1 + $0x5c] sm:$0xf]
  %v86 = vld [vmem:[%s1 + $0x60] sm:$0xf]
  %v87 = vld [vmem:[%s1 + $0x64] sm:$0xf]
  %v88 = vld [vmem:[%s1 + $0x68] sm:$0xf]
  %v89 = vld [vmem:[%s1 + $0x6c] sm:$0xf]
  %v90 = vld [vmem:[%s1 + $0x70] sm:$0xf]
  %v91 = vld [vmem:[%s1 + $0x74] sm:$0xf]
  %v92 = vld [vmem:[%s1 + $0x78] sm:$0xf]
  %v93 = vld [vmem:[%s1 + $0x7c] sm:$0xf]
  %v94 = vld [vmem:[%s2] sm:$0xf]
  %v95 = vld [vmem:[%s2 + $0x4] sm:$0xf]
  %v96 = vld [vmem:[%s2 + $0x8] sm:$0xf]
  %v97 = vld [vmem:[%s2 + $0xc] sm:$0xf]
  %v98 = vld [vmem:[%s2 + $0x10] sm:$0xf]
  %v99 = vld [vmem:[%s2 + $0x14] sm:$0xf]
  %v100 = vld [vmem:[%s2 + $0x18] sm:$0xf]
  %v101 = vld [vmem:[%s2 + $0x1c] sm:$0xf]
  %v102 = vld [vmem:[%s2 + $0x20] sm:$0xf]
  %v103 = vld [vmem:[%s2 + $0x24] sm:$0xf]
  %v104 = vld [vmem:[%s2 + $0x28] sm:$0xf]
  %v105 = vld [vmem:[%s2 + $0x2c] sm:$0xf]
  %v106 = vld [vmem:[%s2 + $0x30] sm:$0xf]
  %v107 = vld [vmem:[%s2 + $0x34] sm:$0xf]
  %v108 = vld [vmem:[%s2 + $0x38] sm:$0xf]
  %v109 = vld [vmem:[%s2 + $0x3c] sm:$0xf]
  %v110 = vld [vmem:[%s3] sm:$0x1]
  %v143 = vunpack.c.l.b16 %v30
  %v144 = vunpack.c.h.b16 %v30
  %v145 = vunpack.c.l.b16 %v31
  %v146 = vunpack.c.h.b16 %v31
  %v147 = vunpack.c.l.b16 %v32
  %v148 = vunpack.c.h.b16 %v32
  %v149 = vunpack.c.l.b16 %v33
  %v150 = vunpack.c.h.b16 %v33
  %v151 = vunpack.c.l.b16 %v34
  %v152 = vunpack.c.h.b16 %v34
  %v153 = vunpack.c.l.b16 %v35
  %v154 = vunpack.c.h.b16 %v35
  %v155 = vunpack.c.l.b16 %v36
  %v156 = vunpack.c.h.b16 %v36
  %v157 = vunpack.c.l.b16 %v37
  %v158 = vunpack.c.h.b16 %v37
  %v159 = vunpack.c.l.b16 %v38
  %v160 = vunpack.c.h.b16 %v38
  %v161 = vunpack.c.l.b16 %v39
  %v162 = vunpack.c.h.b16 %v39
  %v163 = vunpack.c.l.b16 %v40
  %v164 = vunpack.c.h.b16 %v40
  %v165 = vunpack.c.l.b16 %v41
  %v166 = vunpack.c.h.b16 %v41
  %v167 = vunpack.c.l.b16 %v42
  %v168 = vunpack.c.h.b16 %v42
  %v169 = vunpack.c.l.b16 %v43
  %v170 = vunpack.c.h.b16 %v43
  %v171 = vunpack.c.l.b16 %v44
  %v172 = vunpack.c.h.b16 %v44
  %v173 = vunpack.c.l.b16 %v45
  %v174 = vunpack.c.h.b16 %v45
  %v175 = vunpack.c.l.b16 %v46
  %v176 = vunpack.c.h.b16 %v46
  %v177 = vunpack.c.l.b16 %v47
  %v178 = vunpack.c.h.b16 %v47
  %v179 = vunpack.c.l.b16 %v48
  %v180 = vunpack.c.h.b16 %v48
  %v181 = vunpack.c.l.b16 %v49
  %v182 = vunpack.c.h.b16 %v49
  %v183 = vunpack.c.l.b16 %v50
  %v184 = vunpack.c.h.b16 %v50
  %v185 = vunpack.c.l.b16 %v51
  %v186 = vunpack.c.h.b16 %v51
  %v187 = vunpack.c.l.b16 %v52
  %v188 = vunpack.c.h.b16 %v52
  %v189 = vunpack.c.l.b16 %v53
  %v190 = vunpack.c.h.b16 %v53
  %v191 = vunpack.c.l.b16 %v54
  %v192 = vunpack.c.h.b16 %v54
  %v193 = vunpack.c.l.b16 %v55
  %v194 = vunpack.c.h.b16 %v55
  %v195 = vunpack.c.l.b16 %v56
  %v196 = vunpack.c.h.b16 %v56
  %v197 = vunpack.c.l.b16 %v57
  %v198 = vunpack.c.h.b16 %v57
  %v199 = vunpack.c.l.b16 %v58
  %v200 = vunpack.c.h.b16 %v58
  %v201 = vunpack.c.l.b16 %v59
  %v202 = vunpack.c.h.b16 %v59
  %v203 = vunpack.c.l.b16 %v60
  %v204 = vunpack.c.h.b16 %v60
  %v205 = vunpack.c.l.b16 %v61
  %v206 = vunpack.c.h.b16 %v61
  %v207 = vpack.c.b16 %v145, %v143
  %v208 = vpack.c.b16 %v146, %v144
  %v209 = vpack.c.b16 %v149, %v147
  %v210 = vpack.c.b16 %v150, %v148
  %v211 = vpack.c.b16 %v153, %v151
  %v212 = vpack.c.b16 %v154, %v152
  %v213 = vpack.c.b16 %v157, %v155
  %v214 = vpack.c.b16 %v158, %v156
  %v215 = vpack.c.b16 %v161, %v159
  %v216 = vpack.c.b16 %v162, %v160
  %v217 = vpack.c.b16 %v165, %v163
  %v218 = vpack.c.b16 %v166, %v164
  %v219 = vpack.c.b16 %v169, %v167
  %v220 = vpack.c.b16 %v170, %v168
  %v221 = vpack.c.b16 %v173, %v171
  %v222 = vpack.c.b16 %v174, %v172
  %v223 = vpack.c.b16 %v177, %v175
  %v224 = vpack.c.b16 %v178, %v176
  %v225 = vpack.c.b16 %v181, %v179
  %v226 = vpack.c.b16 %v182, %v180
  %v227 = vpack.c.b16 %v185, %v183
  %v228 = vpack.c.b16 %v186, %v184
  %v229 = vpack.c.b16 %v189, %v187
  %v230 = vpack.c.b16 %v190, %v188
  %v231 = vpack.c.b16 %v193, %v191
  %v232 = vpack.c.b16 %v194, %v192
  %v233 = vpack.c.b16 %v197, %v195
  %v234 = vpack.c.b16 %v198, %v196
  %v235 = vpack.c.b16 %v201, %v199
  %v236 = vpack.c.b16 %v202, %v200
  %v237 = vpack.c.b16 %v205, %v203
  %v238 = vpack.c.b16 %v206, %v204
  %v303 = vunpack.c.l.b16 %v62
  %v304 = vunpack.c.l.b16 %v63
  %v305 = vunpack.c.l.b16 %v64
  %v306 = vunpack.c.l.b16 %v65
  %v307 = vunpack.c.l.b16 %v66
  %v308 = vunpack.c.l.b16 %v67
  %v309 = vunpack.c.l.b16 %v68
  %v310 = vunpack.c.l.b16 %v69
  %v311 = vunpack.c.l.b16 %v70
  %v312 = vunpack.c.l.b16 %v71
  %v313 = vunpack.c.l.b16 %v72
  %v314 = vunpack.c.l.b16 %v73
  %v315 = vunpack.c.l.b16 %v74
  %v316 = vunpack.c.l.b16 %v75
  %v317 = vunpack.c.l.b16 %v76
  %v318 = vunpack.c.l.b16 %v77
  %v319 = vunpack.c.l.b16 %v78
  %v320 = vunpack.c.l.b16 %v79
  %v321 = vunpack.c.l.b16 %v80
  %v322 = vunpack.c.l.b16 %v81
  %v323 = vunpack.c.l.b16 %v82
  %v324 = vunpack.c.l.b16 %v83
  %v325 = vunpack.c.l.b16 %v84
  %v326 = vunpack.c.l.b16 %v85
  %v327 = vunpack.c.l.b16 %v86
  %v328 = vunpack.c.l.b16 %v87
  %v329 = vunpack.c.l.b16 %v88
  %v330 = vunpack.c.l.b16 %v89
  %v331 = vunpack.c.l.b16 %v90
  %v332 = vunpack.c.l.b16 %v91
  %v333 = vunpack.c.l.b16 %v92
  %v334 = vunpack.c.l.b16 %v93
  %v335 = vpack.c.b16 %v304, %v303
  %v336 = vpack.c.b16 %v306, %v305
  %v337 = vpack.c.b16 %v308, %v307
  %v338 = vpack.c.b16 %v310, %v309
  %v339 = vpack.c.b16 %v312, %v311
  %v340 = vpack.c.b16 %v314, %v313
  %v341 = vpack.c.b16 %v316, %v315
  %v342 = vpack.c.b16 %v318, %v317
  %v343 = vpack.c.b16 %v320, %v319
  %v344 = vpack.c.b16 %v322, %v321
  %v345 = vpack.c.b16 %v324, %v323
  %v346 = vpack.c.b16 %v326, %v325
  %v347 = vpack.c.b16 %v328, %v327
  %v348 = vpack.c.b16 %v330, %v329
  %v349 = vpack.c.b16 %v332, %v331
  %v350 = vpack.c.b16 %v334, %v333
  %367 = vmatprep.subr.bf16.mxu0 0
  %368 = vmatpush1.bf16.msra.mxu0 %v335
  %369 = vmatprep.subr.bf16.mxu0 0
  %370 = vmatpush1.bf16.msra.mxu0 %v336
  %371 = vmatprep.subr.bf16.mxu0 0
  %372 = vmatpush1.bf16.msra.mxu0 %v337
  %373 = vmatprep.subr.bf16.mxu0 0
  %374 = vmatpush1.bf16.msra.mxu0 %v338
  %375 = vmatprep.subr.bf16.mxu0 0
  %376 = vmatpush1.bf16.msra.mxu0 %v339
  %377 = vmatprep.subr.bf16.mxu0 0
  %378 = vmatpush1.bf16.msra.mxu0 %v340
  %379 = vmatprep.subr.bf16.mxu0 0
  %380 = vmatpush1.bf16.msra.mxu0 %v341
  %381 = vmatprep.subr.bf16.mxu0 0
  %382 = vmatpush1.bf16.msra.mxu0 %v342
  %383 = vmatprep.subr.bf16.mxu0 0
  %384 = vmatpush1.bf16.msra.mxu0 %v343
  %385 = vmatprep.subr.bf16.mxu0 0
  %386 = vmatpush1.bf16.msra.mxu0 %v344
  %387 = vmatprep.subr.bf16.mxu0 0
  %388 = vmatpush1.bf16.msra.mxu0 %v345
  %389 = vmatprep.subr.bf16.mxu0 0
  %390 = vmatpush1.bf16.msra.mxu0 %v346
  %391 = vmatprep.subr.bf16.mxu0 0
  %392 = vmatpush1.bf16.msra.mxu0 %v347
  %393 = vmatprep.subr.bf16.mxu0 0
  %394 = vmatpush1.bf16.msra.mxu0 %v348
  %395 = vmatprep.subr.bf16.mxu0 0
  %396 = vmatpush1.bf16.msra.mxu0 %v349
  %397 = vmatprep.subr.bf16.mxu0 0
  %398 = vmatpush1.bf16.msra.mxu0 %v350
  %399 = vmatprep.mubr.bf16.mxu0 %v208
  %400 = vmatmul.mubr.bf16.gmra.mrb[0].mxu0 %v207
  %v401 = vpop.f32.mrb[0].mxu0
  %v402 = vadd.f32 0.0, %v401
  %v403 = vpop.f32.mrb[0].mxu0
  %v404 = vpop.f32.mrb[0].mxu0
  %v405 = vadd.f32 0.0, %v404
  %v406 = vpop.f32.mrb[0].mxu0
  %407 = vmatprep.mubr.bf16.mxu0 %v210
  %408 = vmatmul.mubr.bf16.gmra.mrb[0].mxu0 %v209
  %v409 = vpop.f32.mrb[0].mxu0
  %v410 = vadd.f32 0.0, %v409
  %v411 = vpop.f32.mrb[0].mxu0
  %v412 = vpop.f32.mrb[0].mxu0
  %v413 = vadd.f32 0.0, %v412
  %v414 = vpop.f32.mrb[0].mxu0
  %415 = vmatprep.mubr.bf16.mxu0 %v212
  %416 = vmatmul.mubr.bf16.gmra.mrb[0].mxu0 %v211
  %v417 = vpop.f32.mrb[0].mxu0
  %v418 = vadd.f32 0.0, %v417
  %v419 = vpop.f32.mrb[0].mxu0
  %v420 = vpop.f32.mrb[0].mxu0
  %v421 = vadd.f32 0.0, %v420
  %v422 = vpop.f32.mrb[0].mxu0
  %423 = vmatprep.mubr.bf16.mxu0 %v214
  %424 = vmatmul.mubr.bf16.gmra.mrb[0].mxu0 %v213
  %v425 = vpop.f32.mrb[0].mxu0
  %v426 = vadd.f32 0.0, %v425
  %v427 = vpop.f32.mrb[0].mxu0
  %v428 = vpop.f32.mrb[0].mxu0
  %v429 = vadd.f32 0.0, %v428
  %v430 = vpop.f32.mrb[0].mxu0
  %431 = vmatprep.mubr.bf16.mxu0 %v216
  %432 = vmatmul.mubr.bf16.gmra.mrb[0].mxu0 %v215
  %v433 = vpop.f32.mrb[0].mxu0
  %v434 = vadd.f32 0.0, %v433
  %v435 = vpop.f32.mrb[0].mxu0
  %v436 = vpop.f32.mrb[0].mxu0
  %v437 = vadd.f32 0.0, %v436
  %v438 = vpop.f32.mrb[0].mxu0
  %439 = vmatprep.mubr.bf16.mxu0 %v218
  %440 = vmatmul.mubr.bf16.gmra.mrb[0].mxu0 %v217
  %v441 = vpop.f32.mrb[0].mxu0
  %v442 = vadd.f32 0.0, %v441
  %v443 = vpop.f32.mrb[0].mxu0
  %v444 = vpop.f32.mrb[0].mxu0
  %v445 = vadd.f32 0.0, %v444
  %v446 = vpop.f32.mrb[0].mxu0
  %447 = vmatprep.mubr.bf16.mxu0 %v220
  %448 = vmatmul.mubr.bf16.gmra.mrb[0].mxu0 %v219
  %v449 = vpop.f32.mrb[0].mxu0
  %v450 = vadd.f32 0.0, %v449
  %v451 = vpop.f32.mrb[0].mxu0
  %v452 = vpop.f32.mrb[0].mxu0
  %v453 = vadd.f32 0.0, %v452
  %v454 = vpop.f32.mrb[0].mxu0
  %455 = vmatprep.mubr.bf16.mxu0 %v222
  %456 = vmatmul.mubr.bf16.gmra.mrb[0].mxu0 %v221
  %v457 = vpop.f32.mrb[0].mxu0
  %v458 = vadd.f32 0.0, %v457
  %v459 = vpop.f32.mrb[0].mxu0
  %v460 = vpop.f32.mrb[0].mxu0
  %v461 = vadd.f32 0.0, %v460
  %v462 = vpop.f32.mrb[0].mxu0
  %463 = vmatprep.mubr.bf16.mxu0 %v224
  %464 = vmatmul.mubr.bf16.gmra.mrb[0].mxu0 %v223
  %v465 = vpop.f32.mrb[0].mxu0
  %v466 = vadd.f32 0.0, %v465
  %v467 = vpop.f32.mrb[0].mxu0
  %v468 = vpop.f32.mrb[0].mxu0
  %v469 = vadd.f32 0.0, %v468
  %v470 = vpop.f32.mrb[0].mxu0
  %471 = vmatprep.mubr.bf16.mxu0 %v226
  %472 = vmatmul.mubr.bf16.gmra.mrb[0].mxu0 %v225
  %v473 = vpop.f32.mrb[0].mxu0
  %v474 = vadd.f32 0.0, %v473
  %v475 = vpop.f32.mrb[0].mxu0
  %v476 = vpop.f32.mrb[0].mxu0
  %v477 = vadd.f32 0.0, %v476
  %v478 = vpop.f32.mrb[0].mxu0
  %479 = vmatprep.mubr.bf16.mxu0 %v228
  %480 = vmatmul.mubr.bf16.gmra.mrb[0].mxu0 %v227
  %v481 = vpop.f32.mrb[0].mxu0
  %v482 = vadd.f32 0.0, %v481
  %v483 = vpop.f32.mrb[0].mxu0
  %v484 = vpop.f32.mrb[0].mxu0
  %v485 = vadd.f32 0.0, %v484
  %v486 = vpop.f32.mrb[0].mxu0
  %487 = vmatprep.mubr.bf16.mxu0 %v230
  %488 = vmatmul.mubr.bf16.gmra.mrb[0].mxu0 %v229
  %v489 = vpop.f32.mrb[0].mxu0
  %v490 = vadd.f32 0.0, %v489
  %v491 = vpop.f32.mrb[0].mxu0
  %v492 = vpop.f32.mrb[0].mxu0
  %v493 = vadd.f32 0.0, %v492
  %v494 = vpop.f32.mrb[0].mxu0
  %495 = vmatprep.mubr.bf16.mxu0 %v232
  %496 = vmatmul.mubr.bf16.gmra.mrb[0].mxu0 %v231
  %v497 = vpop.f32.mrb[0].mxu0
  %v498 = vadd.f32 0.0, %v497
  %v499 = vpop.f32.mrb[0].mxu0
  %v500 = vpop.f32.mrb[0].mxu0
  %v501 = vadd.f32 0.0, %v500
  %v502 = vpop.f32.mrb[0].mxu0
  %503 = vmatprep.mubr.bf16.mxu0 %v234
  %504 = vmatmul.mubr.bf16.gmra.mrb[0].mxu0 %v233
  %v505 = vpop.f32.mrb[0].mxu0
  %v506 = vadd.f32 0.0, %v505
  %v507 = vpop.f32.mrb[0].mxu0
  %v508 = vpop.f32.mrb[0].mxu0
  %v509 = vadd.f32 0.0, %v508
  %v510 = vpop.f32.mrb[0].mxu0
  %511 = vmatprep.mubr.bf16.mxu0 %v236
  %512 = vmatmul.mubr.bf16.gmra.mrb[0].mxu0 %v235
  %v513 = vpop.f32.mrb[0].mxu0
  %v514 = vadd.f32 0.0, %v513
  %v515 = vpop.f32.mrb[0].mxu0
  %v516 = vpop.f32.mrb[0].mxu0
  %v517 = vadd.f32 0.0, %v516
  %v518 = vpop.f32.mrb[0].mxu0
  %519 = vmatprep.mubr.bf16.mxu0 %v238
  %520 = vmatmul.mubr.bf16.gmra.mrb[0].mxu0 %v237
  %v521 = vpop.f32.mrb[0].mxu0
  %v522 = vadd.f32 0.0, %v521
  %v523 = vpop.f32.mrb[0].mxu0
  %v524 = vpop.f32.mrb[0].mxu0
  %v525 = vadd.f32 0.0, %v524
  %v526 = vpop.f32.mrb[0].mxu0
  %527 = vdwg.mxu0
  %v528 = vpack.c.bf16 %v405, %v402
  %v529 = vpack.c.bf16 %v413, %v410
  %v530 = vpack.c.bf16 %v421, %v418
  %v531 = vpack.c.bf16 %v429, %v426
  %v532 = vpack.c.bf16 %v437, %v434
  %v533 = vpack.c.bf16 %v445, %v442
  %v534 = vpack.c.bf16 %v453, %v450
  %v535 = vpack.c.bf16 %v461, %v458
  %v536 = vpack.c.bf16 %v469, %v466
  %v537 = vpack.c.bf16 %v477, %v474
  %v538 = vpack.c.bf16 %v485, %v482
  %v539 = vpack.c.bf16 %v493, %v490
  %v540 = vpack.c.bf16 %v501, %v498
  %v541 = vpack.c.bf16 %v509, %v506
  %v542 = vpack.c.bf16 %v517, %v514
  %v543 = vpack.c.bf16 %v525, %v522
  %v545 = vlaneseq
  %v546 = vshrl.u32 %v545, 7
  %v547 = vsub.s32 0, %v546
  %v548 = vrot.slane %v110, %v547
  %v566 = vunpack.c.l.b16 %v94
  %v567 = vunpack.c.l.b16 %v95
  %v568 = vunpack.c.l.b16 %v96
  %v569 = vunpack.c.l.b16 %v97
  %v570 = vunpack.c.l.b16 %v98
  %v571 = vunpack.c.l.b16 %v99
  %v572 = vunpack.c.l.b16 %v100
  %v573 = vunpack.c.l.b16 %v101
  %v574 = vunpack.c.l.b16 %v102
  %v575 = vunpack.c.l.b16 %v103
  %v576 = vunpack.c.l.b16 %v104
  %v577 = vunpack.c.l.b16 %v105
  %v578 = vunpack.c.l.b16 %v106
  %v579 = vunpack.c.l.b16 %v107
  %v580 = vunpack.c.l.b16 %v108
  %v581 = vunpack.c.l.b16 %v109
  %v582 = vpack.c.b16 %v567, %v566
  %v583 = vpack.c.b16 %v569, %v568
  %v584 = vpack.c.b16 %v571, %v570
  %v585 = vpack.c.b16 %v573, %v572
  %v586 = vpack.c.b16 %v575, %v574
  %v587 = vpack.c.b16 %v577, %v576
  %v588 = vpack.c.b16 %v579, %v578
  %v589 = vpack.c.b16 %v581, %v580
  %598 = vmatprep.subr.bf16.mxu0 0
  %599 = vmatpush1.bf16.msra.mxu0 %v582
  %600 = vmatprep.subr.bf16.mxu0 0
  %601 = vmatpush1.bf16.msra.mxu0 %v583
  %602 = vmatprep.subr.bf16.mxu0 0
  %603 = vmatpush1.bf16.msra.mxu0 %v584
  %604 = vmatprep.subr.bf16.mxu0 0
  %605 = vmatpush1.bf16.msra.mxu0 %v585
  %606 = vmatprep.subr.bf16.mxu0 0
  %607 = vmatpush1.bf16.msra.mxu0 %v586
  %608 = vmatprep.subr.bf16.mxu0 0
  %609 = vmatpush1.bf16.msra.mxu0 %v587
  %610 = vmatprep.subr.bf16.mxu0 0
  %611 = vmatpush1.bf16.msra.mxu0 %v588
  %612 = vmatprep.subr.bf16.mxu0 0
  %613 = vmatpush1.bf16.msra.mxu0 %v589
  %614 = vmatprep.subr.bf16.mxu0 0
  %615 = vmatpush1.bf16.msra.mxu0 0
  %616 = vmatprep.subr.bf16.mxu0 0
  %617 = vmatpush1.bf16.msra.mxu0 0
  %618 = vmatprep.subr.bf16.mxu0 0
  %619 = vmatpush1.bf16.msra.mxu0 0
  %620 = vmatprep.subr.bf16.mxu0 0
  %621 = vmatpush1.bf16.msra.mxu0 0
  %622 = vmatprep.subr.bf16.mxu0 0
  %623 = vmatpush1.bf16.msra.mxu0 0
  %624 = vmatprep.subr.bf16.mxu0 0
  %625 = vmatpush1.bf16.msra.mxu0 0
  %626 = vmatprep.subr.bf16.mxu0 0
  %627 = vmatpush1.bf16.msra.mxu0 0
  %628 = vmatprep.subr.bf16.mxu0 0
  %629 = vmatpush1.bf16.msra.mxu0 0
  %630 = vmatprep.mubr.bf16.mxu0 0
  %631 = vmatmul.mubr.bf16.gmra.mrb[0].mxu0 %v528
  %v632 = vpop.f32.mrb[0].mxu0
  %v633 = vadd.f32 %v548, %v632
  %v634 = vpop.f32.mrb[0].mxu0
  %v635 = vpop.f32.mrb[0].mxu0
  %v636 = vadd.f32 %v548, %v635
  %v637 = vpop.f32.mrb[0].mxu0
  %638 = vmatprep.mubr.bf16.mxu0 0
  %639 = vmatmul.mubr.bf16.gmra.mrb[0].mxu0 %v529
  %v640 = vpop.f32.mrb[0].mxu0
  %v641 = vadd.f32 %v548, %v640
  %v642 = vpop.f32.mrb[0].mxu0
  %v643 = vpop.f32.mrb[0].mxu0
  %v644 = vadd.f32 %v548, %v643
  %v645 = vpop.f32.mrb[0].mxu0
  %646 = vmatprep.mubr.bf16.mxu0 0
  %647 = vmatmul.mubr.bf16.gmra.mrb[0].mxu0 %v530
  %v648 = vpop.f32.mrb[0].mxu0
  %v649 = vadd.f32 %v548, %v648
  %v650 = vpop.f32.mrb[0].mxu0
  %v651 = vpop.f32.mrb[0].mxu0
  %v652 = vadd.f32 %v548, %v651
  %v653 = vpop.f32.mrb[0].mxu0
  %654 = vmatprep.mubr.bf16.mxu0 0
  %655 = vmatmul.mubr.bf16.gmra.mrb[0].mxu0 %v531
  %v656 = vpop.f32.mrb[0].mxu0
  %v657 = vadd.f32 %v548, %v656
  %v658 = vpop.f32.mrb[0].mxu0
  %v659 = vpop.f32.mrb[0].mxu0
  %v660 = vadd.f32 %v548, %v659
  %v661 = vpop.f32.mrb[0].mxu0
  %662 = vmatprep.mubr.bf16.mxu0 0
  %663 = vmatmul.mubr.bf16.gmra.mrb[0].mxu0 %v532
  %v664 = vpop.f32.mrb[0].mxu0
  %v665 = vadd.f32 %v548, %v664
  %v666 = vpop.f32.mrb[0].mxu0
  %v667 = vpop.f32.mrb[0].mxu0
  %v668 = vadd.f32 %v548, %v667
  %v669 = vpop.f32.mrb[0].mxu0
  %670 = vmatprep.mubr.bf16.mxu0 0
  %671 = vmatmul.mubr.bf16.gmra.mrb[0].mxu0 %v533
  %v672 = vpop.f32.mrb[0].mxu0
  %v673 = vadd.f32 %v548, %v672
  %v674 = vpop.f32.mrb[0].mxu0
  %v675 = vpop.f32.mrb[0].mxu0
  %v676 = vadd.f32 %v548, %v675
  %v677 = vpop.f32.mrb[0].mxu0
  %678 = vmatprep.mubr.bf16.mxu0 0
  %679 = vmatmul.mubr.bf16.gmra.mrb[0].mxu0 %v534
  %v680 = vpop.f32.mrb[0].mxu0
  %v681 = vadd.f32 %v548, %v680
  %v682 = vpop.f32.mrb[0].mxu0
  %v683 = vpop.f32.mrb[0].mxu0
  %v684 = vadd.f32 %v548, %v683
  %v685 = vpop.f32.mrb[0].mxu0
  %686 = vmatprep.mubr.bf16.mxu0 0
  %687 = vmatmul.mubr.bf16.gmra.mrb[0].mxu0 %v535
  %v688 = vpop.f32.mrb[0].mxu0
  %v689 = vadd.f32 %v548, %v688
  %v690 = vpop.f32.mrb[0].mxu0
  %v691 = vpop.f32.mrb[0].mxu0
  %v692 = vadd.f32 %v548, %v691
  %v693 = vpop.f32.mrb[0].mxu0
  %694 = vmatprep.mubr.bf16.mxu0 0
  %695 = vmatmul.mubr.bf16.gmra.mrb[0].mxu0 %v536
  %v696 = vpop.f32.mrb[0].mxu0
  %v697 = vadd.f32 %v548, %v696
  %v698 = vpop.f32.mrb[0].mxu0
  %v699 = vpop.f32.mrb[0].mxu0
  %v700 = vadd.f32 %v548, %v699
  %v701 = vpop.f32.mrb[0].mxu0
  %702 = vmatprep.mubr.bf16.mxu0 0
  %703 = vmatmul.mubr.bf16.gmra.mrb[0].mxu0 %v537
  %v704 = vpop.f32.mrb[0].mxu0
  %v705 = vadd.f32 %v548, %v704
  %v706 = vpop.f32.mrb[0].mxu0
  %v707 = vpop.f32.mrb[0].mxu0
  %v708 = vadd.f32 %v548, %v707
  %v709 = vpop.f32.mrb[0].mxu0
  %710 = vmatprep.mubr.bf16.mxu0 0
  %711 = vmatmul.mubr.bf16.gmra.mrb[0].mxu0 %v538
  %v712 = vpop.f32.mrb[0].mxu0
  %v713 = vadd.f32 %v548, %v712
  %v714 = vpop.f32.mrb[0].mxu0
  %v715 = vpop.f32.mrb[0].mxu0
  %v716 = vadd.f32 %v548, %v715
  %v717 = vpop.f32.mrb[0].mxu0
  %718 = vmatprep.mubr.bf16.mxu0 0
  %719 = vmatmul.mubr.bf16.gmra.mrb[0].mxu0 %v539
  %v720 = vpop.f32.mrb[0].mxu0
  %v721 = vadd.f32 %v548, %v720
  %v722 = vpop.f32.mrb[0].mxu0
  %v723 = vpop.f32.mrb[0].mxu0
  %v724 = vadd.f32 %v548, %v723
  %v725 = vpop.f32.mrb[0].mxu0
  %726 = vmatprep.mubr.bf16.mxu0 0
  %727 = vmatmul.mubr.bf16.gmra.mrb[0].mxu0 %v540
  %v728 = vpop.f32.mrb[0].mxu0
  %v729 = vadd.f32 %v548, %v728
  %v730 = vpop.f32.mrb[0].mxu0
  %v731 = vpop.f32.mrb[0].mxu0
  %v732 = vadd.f32 %v548, %v731
  %v733 = vpop.f32.mrb[0].mxu0
  %734 = vmatprep.mubr.bf16.mxu0 0
  %735 = vmatmul.mubr.bf16.gmra.mrb[0].mxu0 %v541
  %v736 = vpop.f32.mrb[0].mxu0
  %v737 = vadd.f32 %v548, %v736
  %v738 = vpop.f32.mrb[0].mxu0
  %v739 = vpop.f32.mrb[0].mxu0
  %v740 = vadd.f32 %v548, %v739
  %v741 = vpop.f32.mrb[0].mxu0
  %742 = vmatprep.mubr.bf16.mxu0 0
  %743 = vmatmul.mubr.bf16.gmra.mrb[0].mxu0 %v542
  %v744 = vpop.f32.mrb[0].mxu0
  %v745 = vadd.f32 %v548, %v744
  %v746 = vpop.f32.mrb[0].mxu0
  %v747 = vpop.f32.mrb[0].mxu0
  %v748 = vadd.f32 %v548, %v747
  %v749 = vpop.f32.mrb[0].mxu0
  %750 = vmatprep.mubr.bf16.mxu0 0
  %751 = vmatmul.mubr.bf16.gmra.mrb[0].mxu0 %v543
  %v752 = vpop.f32.mrb[0].mxu0
  %v753 = vadd.f32 %v548, %v752
  %v754 = vpop.f32.mrb[0].mxu0
  %v755 = vpop.f32.mrb[0].mxu0
  %v756 = vadd.f32 %v548, %v755
  %v757 = vpop.f32.mrb[0].mxu0
  %758 = vdwg.mxu0
  %v759 = vmax.f32 %v633, 0.0
  %v760 = vmax.f32 %v636, 0.0
  %v761 = vmax.f32 %v641, 0.0
  %v762 = vmax.f32 %v644, 0.0
  %v763 = vmax.f32 %v649, 0.0
  %v764 = vmax.f32 %v652, 0.0
  %v765 = vmax.f32 %v657, 0.0
  %v766 = vmax.f32 %v660, 0.0
  %v767 = vmax.f32 %v665, 0.0
  %v768 = vmax.f32 %v668, 0.0
  %v769 = vmax.f32 %v673, 0.0
  %v770 = vmax.f32 %v676, 0.0
  %v771 = vmax.f32 %v681, 0.0
  %v772 = vmax.f32 %v684, 0.0
  %v773 = vmax.f32 %v689, 0.0
  %v774 = vmax.f32 %v692, 0.0
  %v775 = vmax.f32 %v697, 0.0
  %v776 = vmax.f32 %v700, 0.0
  %v777 = vmax.f32 %v705, 0.0
  %v778 = vmax.f32 %v708, 0.0
  %v779 = vmax.f32 %v713, 0.0
  %v780 = vmax.f32 %v716, 0.0
  %v781 = vmax.f32 %v721, 0.0
  %v782 = vmax.f32 %v724, 0.0
  %v783 = vmax.f32 %v729, 0.0
  %v784 = vmax.f32 %v732, 0.0
  %v785 = vmax.f32 %v737, 0.0
  %v786 = vmax.f32 %v740, 0.0
  %v787 = vmax.f32 %v745, 0.0
  %v788 = vmax.f32 %v748, 0.0
  %v789 = vmax.f32 %v753, 0.0
  %v790 = vmax.f32 %v756, 0.0
  %v791 = vpack.c.bf16 %v760, %v759
  %v792 = vpack.c.bf16 %v762, %v761
  %v793 = vpack.c.bf16 %v764, %v763
  %v794 = vpack.c.bf16 %v766, %v765
  %v795 = vpack.c.bf16 %v768, %v767
  %v796 = vpack.c.bf16 %v770, %v769
  %v797 = vpack.c.bf16 %v772, %v771
  %v798 = vpack.c.bf16 %v774, %v773
  %v799 = vpack.c.bf16 %v776, %v775
  %v800 = vpack.c.bf16 %v778, %v777
  %v801 = vpack.c.bf16 %v780, %v779
  %v802 = vpack.c.bf16 %v782, %v781
  %v803 = vpack.c.bf16 %v784, %v783
  %v804 = vpack.c.bf16 %v786, %v785
  %v805 = vpack.c.bf16 %v788, %v787
  %v806 = vpack.c.bf16 %v790, %v789
  %v807 = vld [vmem:[%s4] sm:$0xf]
  %v808 = vld [vmem:[%s4 + $0x4] sm:$0xf]
  %v809 = vld [vmem:[%s4 + $0x8] sm:$0xf]
  %v810 = vld [vmem:[%s4 + $0xc] sm:$0xf]
  %v811 = vld [vmem:[%s4 + $0x10] sm:$0xf]
  %v812 = vld [vmem:[%s4 + $0x14] sm:$0xf]
  %v813 = vld [vmem:[%s4 + $0x18] sm:$0xf]
  %v814 = vld [vmem:[%s4 + $0x1c] sm:$0xf]
  %v815 = vld [vmem:[%s4 + $0x20] sm:$0xf]
  %v816 = vld [vmem:[%s4 + $0x24] sm:$0xf]
  %v817 = vld [vmem:[%s4 + $0x28] sm:$0xf]
  %v818 = vld [vmem:[%s4 + $0x2c] sm:$0xf]
  %v819 = vld [vmem:[%s4 + $0x30] sm:$0xf]
  %v820 = vld [vmem:[%s4 + $0x34] sm:$0xf]
  %v821 = vld [vmem:[%s4 + $0x38] sm:$0xf]
  %v822 = vld [vmem:[%s4 + $0x3c] sm:$0xf]
  %v823 = vld [vmem:[%s5] sm:$0x1]
  %824 = vmatprep.subr.bf16.mxu0 0
  %825 = vmatpush1.bf16.msra.mxu0 %v791
  %826 = vmatprep.subr.bf16.mxu0 0
  %827 = vmatpush1.bf16.msra.mxu0 %v792
  %828 = vmatprep.subr.bf16.mxu0 0
  %829 = vmatpush1.bf16.msra.mxu0 %v793
  %830 = vmatprep.subr.bf16.mxu0 0
  %831 = vmatpush1.bf16.msra.mxu0 %v794
  %832 = vmatprep.subr.bf16.mxu0 0
  %833 = vmatpush1.bf16.msra.mxu0 %v795
  %834 = vmatprep.subr.bf16.mxu0 0
  %835 = vmatpush1.bf16.msra.mxu0 %v796
  %836 = vmatprep.subr.bf16.mxu0 0
  %837 = vmatpush1.bf16.msra.mxu0 %v797
  %838 = vmatprep.subr.bf16.mxu0 0
  %839 = vmatpush1.bf16.msra.mxu0 %v798
  %840 = vmatprep.subr.bf16.mxu0 0
  %841 = vmatpush1.bf16.msra.mxu0 %v799
  %842 = vmatprep.subr.bf16.mxu0 0
  %843 = vmatpush1.bf16.msra.mxu0 %v800
  %844 = vmatprep.subr.bf16.mxu0 0
  %845 = vmatpush1.bf16.msra.mxu0 %v801
  %846 = vmatprep.subr.bf16.mxu0 0
  %847 = vmatpush1.bf16.msra.mxu0 %v802
  %848 = vmatprep.subr.bf16.mxu0 0
  %849 = vmatpush1.bf16.msra.mxu0 %v803
  %850 = vmatprep.subr.bf16.mxu0 0
  %851 = vmatpush1.bf16.msra.mxu0 %v804
  %852 = vmatprep.subr.bf16.mxu0 0
  %853 = vmatpush1.bf16.msra.mxu0 %v805
  %854 = vmatprep.subr.bf16.mxu0 0
  %855 = vmatpush1.bf16.msra.mxu0 %v806
  %856 = vmatprep.mubr.bf16.mxu0 %v208
  %857 = vmatmul.mubr.bf16.gmra.mrb[0].mxu0 %v207
  %v858 = vpop.f32.mrb[0].mxu0
  %v859 = vadd.f32 0.0, %v858
  %v860 = vpop.f32.mrb[0].mxu0
  %v861 = vpop.f32.mrb[0].mxu0
  %v862 = vadd.f32 0.0, %v861
  %v863 = vpop.f32.mrb[0].mxu0
  %864 = vmatprep.mubr.bf16.mxu0 %v210
  %865 = vmatmul.mubr.bf16.gmra.mrb[0].mxu0 %v209
  %v866 = vpop.f32.mrb[0].mxu0
  %v867 = vadd.f32 0.0, %v866
  %v868 = vpop.f32.mrb[0].mxu0
  %v869 = vpop.f32.mrb[0].mxu0
  %v870 = vadd.f32 0.0, %v869
  %v871 = vpop.f32.mrb[0].mxu0
  %872 = vmatprep.mubr.bf16.mxu0 %v212
  %873 = vmatmul.mubr.bf16.gmra.mrb[0].mxu0 %v211
  %v874 = vpop.f32.mrb[0].mxu0
  %v875 = vadd.f32 0.0, %v874
  %v876 = vpop.f32.mrb[0].mxu0
  %v877 = vpop.f32.mrb[0].mxu0
  %v878 = vadd.f32 0.0, %v877
  %v879 = vpop.f32.mrb[0].mxu0
  %880 = vmatprep.mubr.bf16.mxu0 %v214
  %881 = vmatmul.mubr.bf16.gmra.mrb[0].mxu0 %v213
  %v882 = vpop.f32.mrb[0].mxu0
  %v883 = vadd.f32 0.0, %v882
  %v884 = vpop.f32.mrb[0].mxu0
  %v885 = vpop.f32.mrb[0].mxu0
  %v886 = vadd.f32 0.0, %v885
  %v887 = vpop.f32.mrb[0].mxu0
  %888 = vmatprep.mubr.bf16.mxu0 %v216
  %889 = vmatmul.mubr.bf16.gmra.mrb[0].mxu0 %v215
  %v890 = vpop.f32.mrb[0].mxu0
  %v891 = vadd.f32 0.0, %v890
  %v892 = vpop.f32.mrb[0].mxu0
  %v893 = vpop.f32.mrb[0].mxu0
  %v894 = vadd.f32 0.0, %v893
  %v895 = vpop.f32.mrb[0].mxu0
  %896 = vmatprep.mubr.bf16.mxu0 %v218
  %897 = vmatmul.mubr.bf16.gmra.mrb[0].mxu0 %v217
  %v898 = vpop.f32.mrb[0].mxu0
  %v899 = vadd.f32 0.0, %v898
  %v900 = vpop.f32.mrb[0].mxu0
  %v901 = vpop.f32.mrb[0].mxu0
  %v902 = vadd.f32 0.0, %v901
  %v903 = vpop.f32.mrb[0].mxu0
  %904 = vmatprep.mubr.bf16.mxu0 %v220
  %905 = vmatmul.mubr.bf16.gmra.mrb[0].mxu0 %v219
  %v906 = vpop.f32.mrb[0].mxu0
  %v907 = vadd.f32 0.0, %v906
  %v908 = vpop.f32.mrb[0].mxu0
  %v909 = vpop.f32.mrb[0].mxu0
  %v910 = vadd.f32 0.0, %v909
  %v911 = vpop.f32.mrb[0].mxu0
  %912 = vmatprep.mubr.bf16.mxu0 %v222
  %913 = vmatmul.mubr.bf16.gmra.mrb[0].mxu0 %v221
  %v914 = vpop.f32.mrb[0].mxu0
  %v915 = vadd.f32 0.0, %v914
  %v916 = vpop.f32.mrb[0].mxu0
  %v917 = vpop.f32.mrb[0].mxu0
  %v918 = vadd.f32 0.0, %v917
  %v919 = vpop.f32.mrb[0].mxu0
  %920 = vmatprep.mubr.bf16.mxu0 %v224
  %921 = vmatmul.mubr.bf16.gmra.mrb[0].mxu0 %v223
  %v922 = vpop.f32.mrb[0].mxu0
  %v923 = vadd.f32 0.0, %v922
  %v924 = vpop.f32.mrb[0].mxu0
  %v925 = vpop.f32.mrb[0].mxu0
  %v926 = vadd.f32 0.0, %v925
  %v927 = vpop.f32.mrb[0].mxu0
  %928 = vmatprep.mubr.bf16.mxu0 %v226
  %929 = vmatmul.mubr.bf16.gmra.mrb[0].mxu0 %v225
  %v930 = vpop.f32.mrb[0].mxu0
  %v931 = vadd.f32 0.0, %v930
  %v932 = vpop.f32.mrb[0].mxu0
  %v933 = vpop.f32.mrb[0].mxu0
  %v934 = vadd.f32 0.0, %v933
  %v935 = vpop.f32.mrb[0].mxu0
  %936 = vmatprep.mubr.bf16.mxu0 %v228
  %937 = vmatmul.mubr.bf16.gmra.mrb[0].mxu0 %v227
  %v938 = vpop.f32.mrb[0].mxu0
  %v939 = vadd.f32 0.0, %v938
  %v940 = vpop.f32.mrb[0].mxu0
  %v941 = vpop.f32.mrb[0].mxu0
  %v942 = vadd.f32 0.0, %v941
  %v943 = vpop.f32.mrb[0].mxu0
  %944 = vmatprep.mubr.bf16.mxu0 %v230
  %945 = vmatmul.mubr.bf16.gmra.mrb[0].mxu0 %v229
  %v946 = vpop.f32.mrb[0].mxu0
  %v947 = vadd.f32 0.0, %v946
  %v948 = vpop.f32.mrb[0].mxu0
  %v949 = vpop.f32.mrb[0].mxu0
  %v950 = vadd.f32 0.0, %v949
  %v951 = vpop.f32.mrb[0].mxu0
  %952 = vmatprep.mubr.bf16.mxu0 %v232
  %953 = vmatmul.mubr.bf16.gmra.mrb[0].mxu0 %v231
  %v954 = vpop.f32.mrb[0].mxu0
  %v955 = vadd.f32 0.0, %v954
  %v956 = vpop.f32.mrb[0].mxu0
  %v957 = vpop.f32.mrb[0].mxu0
  %v958 = vadd.f32 0.0, %v957
  %v959 = vpop.f32.mrb[0].mxu0
  %960 = vmatprep.mubr.bf16.mxu0 %v234
  %961 = vmatmul.mubr.bf16.gmra.mrb[0].mxu0 %v233
  %v962 = vpop.f32.mrb[0].mxu0
  %v963 = vadd.f32 0.0, %v962
  %v964 = vpop.f32.mrb[0].mxu0
  %v965 = vpop.f32.mrb[0].mxu0
  %v966 = vadd.f32 0.0, %v965
  %v967 = vpop.f32.mrb[0].mxu0
  %968 = vmatprep.mubr.bf16.mxu0 %v236
  %969 = vmatmul.mubr.bf16.gmra.mrb[0].mxu0 %v235
  %v970 = vpop.f32.mrb[0].mxu0
  %v971 = vadd.f32 0.0, %v970
  %v972 = vpop.f32.mrb[0].mxu0
  %v973 = vpop.f32.mrb[0].mxu0
  %v974 = vadd.f32 0.0, %v973
  %v975 = vpop.f32.mrb[0].mxu0
  %976 = vmatprep.mubr.bf16.mxu0 %v238
  %977 = vmatmul.mubr.bf16.gmra.mrb[0].mxu0 %v237
  %v978 = vpop.f32.mrb[0].mxu0
  %v979 = vadd.f32 0.0, %v978
  %v980 = vpop.f32.mrb[0].mxu0
  %v981 = vpop.f32.mrb[0].mxu0
  %v982 = vadd.f32 0.0, %v981
  %v983 = vpop.f32.mrb[0].mxu0
  %984 = vdwg.mxu0
  %v985 = vpack.c.bf16 %v862, %v859
  %v986 = vpack.c.bf16 %v870, %v867
  %v987 = vpack.c.bf16 %v878, %v875
  %v988 = vpack.c.bf16 %v886, %v883
  %v989 = vpack.c.bf16 %v894, %v891
  %v990 = vpack.c.bf16 %v902, %v899
  %v991 = vpack.c.bf16 %v910, %v907
  %v992 = vpack.c.bf16 %v918, %v915
  %v993 = vpack.c.bf16 %v926, %v923
  %v994 = vpack.c.bf16 %v934, %v931
  %v995 = vpack.c.bf16 %v942, %v939
  %v996 = vpack.c.bf16 %v950, %v947
  %v997 = vpack.c.bf16 %v958, %v955
  %v998 = vpack.c.bf16 %v966, %v963
  %v999 = vpack.c.bf16 %v974, %v971
  %v1000 = vpack.c.bf16 %v982, %v979
  %v1002 = vlaneseq
  %v1003 = vshrl.u32 %v1002, 7
  %v1004 = vsub.s32 0, %v1003
  %v1005 = vrot.slane %v823, %v1004
  %v1023 = vunpack.c.l.b16 %v807
  %v1024 = vunpack.c.l.b16 %v808
  %v1025 = vunpack.c.l.b16 %v809
  %v1026 = vunpack.c.l.b16 %v810
  %v1027 = vunpack.c.l.b16 %v811
  %v1028 = vunpack.c.l.b16 %v812
  %v1029 = vunpack.c.l.b16 %v813
  %v1030 = vunpack.c.l.b16 %v814
  %v1031 = vunpack.c.l.b16 %v815
  %v1032 = vunpack.c.l.b16 %v816
  %v1033 = vunpack.c.l.b16 %v817
  %v1034 = vunpack.c.l.b16 %v818
  %v1035 = vunpack.c.l.b16 %v819
  %v1036 = vunpack.c.l.b16 %v820
  %v1037 = vunpack.c.l.b16 %v821
  %v1038 = vunpack.c.l.b16 %v822
  %v1039 = vpack.c.b16 %v1024, %v1023
  %v1040 = vpack.c.b16 %v1026, %v1025
  %v1041 = vpack.c.b16 %v1028, %v1027
  %v1042 = vpack.c.b16 %v1030, %v1029
  %v1043 = vpack.c.b16 %v1032, %v1031
  %v1044 = vpack.c.b16 %v1034, %v1033
  %v1045 = vpack.c.b16 %v1036, %v1035
  %v1046 = vpack.c.b16 %v1038, %v1037
  %1055 = vmatprep.subr.bf16.mxu0 0
  %1056 = vmatpush1.bf16.msra.mxu0 %v1039
  %1057 = vmatprep.subr.bf16.mxu0 0
  %1058 = vmatpush1.bf16.msra.mxu0 %v1040
  %1059 = vmatprep.subr.bf16.mxu0 0
  %1060 = vmatpush1.bf16.msra.mxu0 %v1041
  %1061 = vmatprep.subr.bf16.mxu0 0
  %1062 = vmatpush1.bf16.msra.mxu0 %v1042
  %1063 = vmatprep.subr.bf16.mxu0 0
  %1064 = vmatpush1.bf16.msra.mxu0 %v1043
  %1065 = vmatprep.subr.bf16.mxu0 0
  %1066 = vmatpush1.bf16.msra.mxu0 %v1044
  %1067 = vmatprep.subr.bf16.mxu0 0
  %1068 = vmatpush1.bf16.msra.mxu0 %v1045
  %1069 = vmatprep.subr.bf16.mxu0 0
  %1070 = vmatpush1.bf16.msra.mxu0 %v1046
  %1071 = vmatprep.subr.bf16.mxu0 0
  %1072 = vmatpush1.bf16.msra.mxu0 0
  %1073 = vmatprep.subr.bf16.mxu0 0
  %1074 = vmatpush1.bf16.msra.mxu0 0
  %1075 = vmatprep.subr.bf16.mxu0 0
  %1076 = vmatpush1.bf16.msra.mxu0 0
  %1077 = vmatprep.subr.bf16.mxu0 0
  %1078 = vmatpush1.bf16.msra.mxu0 0
  %1079 = vmatprep.subr.bf16.mxu0 0
  %1080 = vmatpush1.bf16.msra.mxu0 0
  %1081 = vmatprep.subr.bf16.mxu0 0
  %1082 = vmatpush1.bf16.msra.mxu0 0
  %1083 = vmatprep.subr.bf16.mxu0 0
  %1084 = vmatpush1.bf16.msra.mxu0 0
  %1085 = vmatprep.subr.bf16.mxu0 0
  %1086 = vmatpush1.bf16.msra.mxu0 0
  %1087 = vmatprep.mubr.bf16.mxu0 0
  %1088 = vmatmul.mubr.bf16.gmra.mrb[0].mxu0 %v985
  %v1089 = vpop.f32.mrb[0].mxu0
  %v1090 = vadd.f32 %v1005, %v1089
  %v1091 = vpop.f32.mrb[0].mxu0
  %v1092 = vpop.f32.mrb[0].mxu0
  %v1093 = vadd.f32 %v1005, %v1092
  %v1094 = vpop.f32.mrb[0].mxu0
  %1095 = vmatprep.mubr.bf16.mxu0 0
  %1096 = vmatmul.mubr.bf16.gmra.mrb[0].mxu0 %v986
  %v1097 = vpop.f32.mrb[0].mxu0
  %v1098 = vadd.f32 %v1005, %v1097
  %v1099 = vpop.f32.mrb[0].mxu0
  %v1100 = vpop.f32.mrb[0].mxu0
  %v1101 = vadd.f32 %v1005, %v1100
  %v1102 = vpop.f32.mrb[0].mxu0
  %1103 = vmatprep.mubr.bf16.mxu0 0
  %1104 = vmatmul.mubr.bf16.gmra.mrb[0].mxu0 %v987
  %v1105 = vpop.f32.mrb[0].mxu0
  %v1106 = vadd.f32 %v1005, %v1105
  %v1107 = vpop.f32.mrb[0].mxu0
  %v1108 = vpop.f32.mrb[0].mxu0
  %v1109 = vadd.f32 %v1005, %v1108
  %v1110 = vpop.f32.mrb[0].mxu0
  %1111 = vmatprep.mubr.bf16.mxu0 0
  %1112 = vmatmul.mubr.bf16.gmra.mrb[0].mxu0 %v988
  %v1113 = vpop.f32.mrb[0].mxu0
  %v1114 = vadd.f32 %v1005, %v1113
  %v1115 = vpop.f32.mrb[0].mxu0
  %v1116 = vpop.f32.mrb[0].mxu0
  %v1117 = vadd.f32 %v1005, %v1116
  %v1118 = vpop.f32.mrb[0].mxu0
  %1119 = vmatprep.mubr.bf16.mxu0 0
  %1120 = vmatmul.mubr.bf16.gmra.mrb[0].mxu0 %v989
  %v1121 = vpop.f32.mrb[0].mxu0
  %v1122 = vadd.f32 %v1005, %v1121
  %v1123 = vpop.f32.mrb[0].mxu0
  %v1124 = vpop.f32.mrb[0].mxu0
  %v1125 = vadd.f32 %v1005, %v1124
  %v1126 = vpop.f32.mrb[0].mxu0
  %1127 = vmatprep.mubr.bf16.mxu0 0
  %1128 = vmatmul.mubr.bf16.gmra.mrb[0].mxu0 %v990
  %v1129 = vpop.f32.mrb[0].mxu0
  %v1130 = vadd.f32 %v1005, %v1129
  %v1131 = vpop.f32.mrb[0].mxu0
  %v1132 = vpop.f32.mrb[0].mxu0
  %v1133 = vadd.f32 %v1005, %v1132
  %v1134 = vpop.f32.mrb[0].mxu0
  %1135 = vmatprep.mubr.bf16.mxu0 0
  %1136 = vmatmul.mubr.bf16.gmra.mrb[0].mxu0 %v991
  %v1137 = vpop.f32.mrb[0].mxu0
  %v1138 = vadd.f32 %v1005, %v1137
  %v1139 = vpop.f32.mrb[0].mxu0
  %v1140 = vpop.f32.mrb[0].mxu0
  %v1141 = vadd.f32 %v1005, %v1140
  %v1142 = vpop.f32.mrb[0].mxu0
  %1143 = vmatprep.mubr.bf16.mxu0 0
  %1144 = vmatmul.mubr.bf16.gmra.mrb[0].mxu0 %v992
  %v1145 = vpop.f32.mrb[0].mxu0
  %v1146 = vadd.f32 %v1005, %v1145
  %v1147 = vpop.f32.mrb[0].mxu0
  %v1148 = vpop.f32.mrb[0].mxu0
  %v1149 = vadd.f32 %v1005, %v1148
  %v1150 = vpop.f32.mrb[0].mxu0
  %1151 = vmatprep.mubr.bf16.mxu0 0
  %1152 = vmatmul.mubr.bf16.gmra.mrb[0].mxu0 %v993
  %v1153 = vpop.f32.mrb[0].mxu0
  %v1154 = vadd.f32 %v1005, %v1153
  %v1155 = vpop.f32.mrb[0].mxu0
  %v1156 = vpop.f32.mrb[0].mxu0
  %v1157 = vadd.f32 %v1005, %v1156
  %v1158 = vpop.f32.mrb[0].mxu0
  %1159 = vmatprep.mubr.bf16.mxu0 0
  %1160 = vmatmul.mubr.bf16.gmra.mrb[0].mxu0 %v994
  %v1161 = vpop.f32.mrb[0].mxu0
  %v1162 = vadd.f32 %v1005, %v1161
  %v1163 = vpop.f32.mrb[0].mxu0
  %v1164 = vpop.f32.mrb[0].mxu0
  %v1165 = vadd.f32 %v1005, %v1164
  %v1166 = vpop.f32.mrb[0].mxu0
  %1167 = vmatprep.mubr.bf16.mxu0 0
  %1168 = vmatmul.mubr.bf16.gmra.mrb[0].mxu0 %v995
  %v1169 = vpop.f32.mrb[0].mxu0
  %v1170 = vadd.f32 %v1005, %v1169
  %v1171 = vpop.f32.mrb[0].mxu0
  %v1172 = vpop.f32.mrb[0].mxu0
  %v1173 = vadd.f32 %v1005, %v1172
  %v1174 = vpop.f32.mrb[0].mxu0
  %1175 = vmatprep.mubr.bf16.mxu0 0
  %1176 = vmatmul.mubr.bf16.gmra.mrb[0].mxu0 %v996
  %v1177 = vpop.f32.mrb[0].mxu0
  %v1178 = vadd.f32 %v1005, %v1177
  %v1179 = vpop.f32.mrb[0].mxu0
  %v1180 = vpop.f32.mrb[0].mxu0
  %v1181 = vadd.f32 %v1005, %v1180
  %v1182 = vpop.f32.mrb[0].mxu0
  %1183 = vmatprep.mubr.bf16.mxu0 0
  %1184 = vmatmul.mubr.bf16.gmra.mrb[0].mxu0 %v997
  %v1185 = vpop.f32.mrb[0].mxu0
  %v1186 = vadd.f32 %v1005, %v1185
  %v1187 = vpop.f32.mrb[0].mxu0
  %v1188 = vpop.f32.mrb[0].mxu0
  %v1189 = vadd.f32 %v1005, %v1188
  %v1190 = vpop.f32.mrb[0].mxu0
  %1191 = vmatprep.mubr.bf16.mxu0 0
  %1192 = vmatmul.mubr.bf16.gmra.mrb[0].mxu0 %v998
  %v1193 = vpop.f32.mrb[0].mxu0
  %v1194 = vadd.f32 %v1005, %v1193
  %v1195 = vpop.f32.mrb[0].mxu0
  %v1196 = vpop.f32.mrb[0].mxu0
  %v1197 = vadd.f32 %v1005, %v1196
  %v1198 = vpop.f32.mrb[0].mxu0
  %1199 = vmatprep.mubr.bf16.mxu0 0
  %1200 = vmatmul.mubr.bf16.gmra.mrb[0].mxu0 %v999
  %v1201 = vpop.f32.mrb[0].mxu0
  %v1202 = vadd.f32 %v1005, %v1201
  %v1203 = vpop.f32.mrb[0].mxu0
  %v1204 = vpop.f32.mrb[0].mxu0
  %v1205 = vadd.f32 %v1005, %v1204
  %v1206 = vpop.f32.mrb[0].mxu0
  %1207 = vmatprep.mubr.bf16.mxu0 0
  %1208 = vmatmul.mubr.bf16.gmra.mrb[0].mxu0 %v1000
  %v1209 = vpop.f32.mrb[0].mxu0
  %v1210 = vadd.f32 %v1005, %v1209
  %v1211 = vpop.f32.mrb[0].mxu0
  %v1212 = vpop.f32.mrb[0].mxu0
  %v1213 = vadd.f32 %v1005, %v1212
  %v1214 = vpop.f32.mrb[0].mxu0
  %1215 = vdwg.mxu0
  %v1216 = vmax.f32 %v1090, 0.0
  %v1217 = vmax.f32 %v1093, 0.0
  %v1218 = vmax.f32 %v1098, 0.0
  %v1219 = vmax.f32 %v1101, 0.0
  %v1220 = vmax.f32 %v1106, 0.0
  %v1221 = vmax.f32 %v1109, 0.0
  %v1222 = vmax.f32 %v1114, 0.0
  %v1223 = vmax.f32 %v1117, 0.0
  %v1224 = vmax.f32 %v1122, 0.0
  %v1225 = vmax.f32 %v1125, 0.0
  %v1226 = vmax.f32 %v1130, 0.0
  %v1227 = vmax.f32 %v1133, 0.0
  %v1228 = vmax.f32 %v1138, 0.0
  %v1229 = vmax.f32 %v1141, 0.0
  %v1230 = vmax.f32 %v1146, 0.0
  %v1231 = vmax.f32 %v1149, 0.0
  %v1232 = vmax.f32 %v1154, 0.0
  %v1233 = vmax.f32 %v1157, 0.0
  %v1234 = vmax.f32 %v1162, 0.0
  %v1235 = vmax.f32 %v1165, 0.0
  %v1236 = vmax.f32 %v1170, 0.0
  %v1237 = vmax.f32 %v1173, 0.0
  %v1238 = vmax.f32 %v1178, 0.0
  %v1239 = vmax.f32 %v1181, 0.0
  %v1240 = vmax.f32 %v1186, 0.0
  %v1241 = vmax.f32 %v1189, 0.0
  %v1242 = vmax.f32 %v1194, 0.0
  %v1243 = vmax.f32 %v1197, 0.0
  %v1244 = vmax.f32 %v1202, 0.0
  %v1245 = vmax.f32 %v1205, 0.0
  %v1246 = vmax.f32 %v1210, 0.0
  %v1247 = vmax.f32 %v1213, 0.0
  %v1248 = vmax.f32 %v759, %v1216
  %v1249 = vmax.f32 %v760, %v1217
  %v1250 = vmax.f32 %v761, %v1218
  %v1251 = vmax.f32 %v762, %v1219
  %v1252 = vmax.f32 %v763, %v1220
  %v1253 = vmax.f32 %v764, %v1221
  %v1254 = vmax.f32 %v765, %v1222
  %v1255 = vmax.f32 %v766, %v1223
  %v1256 = vmax.f32 %v767, %v1224
  %v1257 = vmax.f32 %v768, %v1225
  %v1258 = vmax.f32 %v769, %v1226
  %v1259 = vmax.f32 %v770, %v1227
  %v1260 = vmax.f32 %v771, %v1228
  %v1261 = vmax.f32 %v772, %v1229
  %v1262 = vmax.f32 %v773, %v1230
  %v1263 = vmax.f32 %v774, %v1231
  %v1264 = vmax.f32 %v775, %v1232
  %v1265 = vmax.f32 %v776, %v1233
  %v1266 = vmax.f32 %v777, %v1234
  %v1267 = vmax.f32 %v778, %v1235
  %v1268 = vmax.f32 %v779, %v1236
  %v1269 = vmax.f32 %v780, %v1237
  %v1270 = vmax.f32 %v781, %v1238
  %v1271 = vmax.f32 %v782, %v1239
  %v1272 = vmax.f32 %v783, %v1240
  %v1273 = vmax.f32 %v784, %v1241
  %v1274 = vmax.f32 %v785, %v1242
  %v1275 = vmax.f32 %v786, %v1243
  %v1276 = vmax.f32 %v787, %v1244
  %v1277 = vmax.f32 %v788, %v1245
  %v1278 = vmax.f32 %v789, %v1246
  %v1279 = vmax.f32 %v790, %v1247
  %v1280 = vpack.c.bf16 %v1217, %v1216
  %v1281 = vpack.c.bf16 %v1219, %v1218
  %v1282 = vpack.c.bf16 %v1221, %v1220
  %v1283 = vpack.c.bf16 %v1223, %v1222
  %v1284 = vpack.c.bf16 %v1225, %v1224
  %v1285 = vpack.c.bf16 %v1227, %v1226
  %v1286 = vpack.c.bf16 %v1229, %v1228
  %v1287 = vpack.c.bf16 %v1231, %v1230
  %v1288 = vpack.c.bf16 %v1233, %v1232
  %v1289 = vpack.c.bf16 %v1235, %v1234
  %v1290 = vpack.c.bf16 %v1237, %v1236
  %v1291 = vpack.c.bf16 %v1239, %v1238
  %v1292 = vpack.c.bf16 %v1241, %v1240
  %v1293 = vpack.c.bf16 %v1243, %v1242
  %v1294 = vpack.c.bf16 %v1245, %v1244
  %v1295 = vpack.c.bf16 %v1247, %v1246
  %v1296 = vld [vmem:[%s6] sm:$0xf]
  %v1297 = vld [vmem:[%s6 + $0x4] sm:$0xf]
  %v1298 = vld [vmem:[%s6 + $0x8] sm:$0xf]
  %v1299 = vld [vmem:[%s6 + $0xc] sm:$0xf]
  %v1300 = vld [vmem:[%s6 + $0x10] sm:$0xf]
  %v1301 = vld [vmem:[%s6 + $0x14] sm:$0xf]
  %v1302 = vld [vmem:[%s6 + $0x18] sm:$0xf]
  %v1303 = vld [vmem:[%s6 + $0x1c] sm:$0xf]
  %v1304 = vld [vmem:[%s6 + $0x20] sm:$0xf]
  %v1305 = vld [vmem:[%s6 + $0x24] sm:$0xf]
  %v1306 = vld [vmem:[%s6 + $0x28] sm:$0xf]
  %v1307 = vld [vmem:[%s6 + $0x2c] sm:$0xf]
  %v1308 = vld [vmem:[%s6 + $0x30] sm:$0xf]
  %v1309 = vld [vmem:[%s6 + $0x34] sm:$0xf]
  %v1310 = vld [vmem:[%s6 + $0x38] sm:$0xf]
  %v1311 = vld [vmem:[%s6 + $0x3c] sm:$0xf]
  %v1312 = vld [vmem:[%s7] sm:$0x1]
  %1313 = vmatprep.subr.bf16.mxu0 0
  %1314 = vmatpush1.bf16.msra.mxu0 %v1280
  %1315 = vmatprep.subr.bf16.mxu0 0
  %1316 = vmatpush1.bf16.msra.mxu0 %v1281
  %1317 = vmatprep.subr.bf16.mxu0 0
  %1318 = vmatpush1.bf16.msra.mxu0 %v1282
  %1319 = vmatprep.subr.bf16.mxu0 0
  %1320 = vmatpush1.bf16.msra.mxu0 %v1283
  %1321 = vmatprep.subr.bf16.mxu0 0
  %1322 = vmatpush1.bf16.msra.mxu0 %v1284
  %1323 = vmatprep.subr.bf16.mxu0 0
  %1324 = vmatpush1.bf16.msra.mxu0 %v1285
  %1325 = vmatprep.subr.bf16.mxu0 0
  %1326 = vmatpush1.bf16.msra.mxu0 %v1286
  %1327 = vmatprep.subr.bf16.mxu0 0
  %1328 = vmatpush1.bf16.msra.mxu0 %v1287
  %1329 = vmatprep.subr.bf16.mxu0 0
  %1330 = vmatpush1.bf16.msra.mxu0 %v1288
  %1331 = vmatprep.subr.bf16.mxu0 0
  %1332 = vmatpush1.bf16.msra.mxu0 %v1289
  %1333 = vmatprep.subr.bf16.mxu0 0
  %1334 = vmatpush1.bf16.msra.mxu0 %v1290
  %1335 = vmatprep.subr.bf16.mxu0 0
  %1336 = vmatpush1.bf16.msra.mxu0 %v1291
  %1337 = vmatprep.subr.bf16.mxu0 0
  %1338 = vmatpush1.bf16.msra.mxu0 %v1292
  %1339 = vmatprep.subr.bf16.mxu0 0
  %1340 = vmatpush1.bf16.msra.mxu0 %v1293
  %1341 = vmatprep.subr.bf16.mxu0 0
  %1342 = vmatpush1.bf16.msra.mxu0 %v1294
  %1343 = vmatprep.subr.bf16.mxu0 0
  %1344 = vmatpush1.bf16.msra.mxu0 %v1295
  %1345 = vmatprep.mubr.bf16.mxu0 %v208
  %1346 = vmatmul.mubr.bf16.gmra.mrb[0].mxu0 %v207
  %v1347 = vpop.f32.mrb[0].mxu0
  %v1348 = vadd.f32 0.0, %v1347
  %v1349 = vpop.f32.mrb[0].mxu0
  %v1350 = vpop.f32.mrb[0].mxu0
  %v1351 = vadd.f32 0.0, %v1350
  %v1352 = vpop.f32.mrb[0].mxu0
  %1353 = vmatprep.mubr.bf16.mxu0 %v210
  %1354 = vmatmul.mubr.bf16.gmra.mrb[0].mxu0 %v209
  %v1355 = vpop.f32.mrb[0].mxu0
  %v1356 = vadd.f32 0.0, %v1355
  %v1357 = vpop.f32.mrb[0].mxu0
  %v1358 = vpop.f32.mrb[0].mxu0
  %v1359 = vadd.f32 0.0, %v1358
  %v1360 = vpop.f32.mrb[0].mxu0
  %1361 = vmatprep.mubr.bf16.mxu0 %v212
  %1362 = vmatmul.mubr.bf16.gmra.mrb[0].mxu0 %v211
  %v1363 = vpop.f32.mrb[0].mxu0
  %v1364 = vadd.f32 0.0, %v1363
  %v1365 = vpop.f32.mrb[0].mxu0
  %v1366 = vpop.f32.mrb[0].mxu0
  %v1367 = vadd.f32 0.0, %v1366
  %v1368 = vpop.f32.mrb[0].mxu0
  %1369 = vmatprep.mubr.bf16.mxu0 %v214
  %1370 = vmatmul.mubr.bf16.gmra.mrb[0].mxu0 %v213
  %v1371 = vpop.f32.mrb[0].mxu0
  %v1372 = vadd.f32 0.0, %v1371
  %v1373 = vpop.f32.mrb[0].mxu0
  %v1374 = vpop.f32.mrb[0].mxu0
  %v1375 = vadd.f32 0.0, %v1374
  %v1376 = vpop.f32.mrb[0].mxu0
  %1377 = vmatprep.mubr.bf16.mxu0 %v216
  %1378 = vmatmul.mubr.bf16.gmra.mrb[0].mxu0 %v215
  %v1379 = vpop.f32.mrb[0].mxu0
  %v1380 = vadd.f32 0.0, %v1379
  %v1381 = vpop.f32.mrb[0].mxu0
  %v1382 = vpop.f32.mrb[0].mxu0
  %v1383 = vadd.f32 0.0, %v1382
  %v1384 = vpop.f32.mrb[0].mxu0
  %1385 = vmatprep.mubr.bf16.mxu0 %v218
  %1386 = vmatmul.mubr.bf16.gmra.mrb[0].mxu0 %v217
  %v1387 = vpop.f32.mrb[0].mxu0
  %v1388 = vadd.f32 0.0, %v1387
  %v1389 = vpop.f32.mrb[0].mxu0
  %v1390 = vpop.f32.mrb[0].mxu0
  %v1391 = vadd.f32 0.0, %v1390
  %v1392 = vpop.f32.mrb[0].mxu0
  %1393 = vmatprep.mubr.bf16.mxu0 %v220
  %1394 = vmatmul.mubr.bf16.gmra.mrb[0].mxu0 %v219
  %v1395 = vpop.f32.mrb[0].mxu0
  %v1396 = vadd.f32 0.0, %v1395
  %v1397 = vpop.f32.mrb[0].mxu0
  %v1398 = vpop.f32.mrb[0].mxu0
  %v1399 = vadd.f32 0.0, %v1398
  %v1400 = vpop.f32.mrb[0].mxu0
  %1401 = vmatprep.mubr.bf16.mxu0 %v222
  %1402 = vmatmul.mubr.bf16.gmra.mrb[0].mxu0 %v221
  %v1403 = vpop.f32.mrb[0].mxu0
  %v1404 = vadd.f32 0.0, %v1403
  %v1405 = vpop.f32.mrb[0].mxu0
  %v1406 = vpop.f32.mrb[0].mxu0
  %v1407 = vadd.f32 0.0, %v1406
  %v1408 = vpop.f32.mrb[0].mxu0
  %1409 = vmatprep.mubr.bf16.mxu0 %v224
  %1410 = vmatmul.mubr.bf16.gmra.mrb[0].mxu0 %v223
  %v1411 = vpop.f32.mrb[0].mxu0
  %v1412 = vadd.f32 0.0, %v1411
  %v1413 = vpop.f32.mrb[0].mxu0
  %v1414 = vpop.f32.mrb[0].mxu0
  %v1415 = vadd.f32 0.0, %v1414
  %v1416 = vpop.f32.mrb[0].mxu0
  %1417 = vmatprep.mubr.bf16.mxu0 %v226
  %1418 = vmatmul.mubr.bf16.gmra.mrb[0].mxu0 %v225
  %v1419 = vpop.f32.mrb[0].mxu0
  %v1420 = vadd.f32 0.0, %v1419
  %v1421 = vpop.f32.mrb[0].mxu0
  %v1422 = vpop.f32.mrb[0].mxu0
  %v1423 = vadd.f32 0.0, %v1422
  %v1424 = vpop.f32.mrb[0].mxu0
  %1425 = vmatprep.mubr.bf16.mxu0 %v228
  %1426 = vmatmul.mubr.bf16.gmra.mrb[0].mxu0 %v227
  %v1427 = vpop.f32.mrb[0].mxu0
  %v1428 = vadd.f32 0.0, %v1427
  %v1429 = vpop.f32.mrb[0].mxu0
  %v1430 = vpop.f32.mrb[0].mxu0
  %v1431 = vadd.f32 0.0, %v1430
  %v1432 = vpop.f32.mrb[0].mxu0
  %1433 = vmatprep.mubr.bf16.mxu0 %v230
  %1434 = vmatmul.mubr.bf16.gmra.mrb[0].mxu0 %v229
  %v1435 = vpop.f32.mrb[0].mxu0
  %v1436 = vadd.f32 0.0, %v1435
  %v1437 = vpop.f32.mrb[0].mxu0
  %v1438 = vpop.f32.mrb[0].mxu0
  %v1439 = vadd.f32 0.0, %v1438
  %v1440 = vpop.f32.mrb[0].mxu0
  %1441 = vmatprep.mubr.bf16.mxu0 %v232
  %1442 = vmatmul.mubr.bf16.gmra.mrb[0].mxu0 %v231
  %v1443 = vpop.f32.mrb[0].mxu0
  %v1444 = vadd.f32 0.0, %v1443
  %v1445 = vpop.f32.mrb[0].mxu0
  %v1446 = vpop.f32.mrb[0].mxu0
  %v1447 = vadd.f32 0.0, %v1446
  %v1448 = vpop.f32.mrb[0].mxu0
  %1449 = vmatprep.mubr.bf16.mxu0 %v234
  %1450 = vmatmul.mubr.bf16.gmra.mrb[0].mxu0 %v233
  %v1451 = vpop.f32.mrb[0].mxu0
  %v1452 = vadd.f32 0.0, %v1451
  %v1453 = vpop.f32.mrb[0].mxu0
  %v1454 = vpop.f32.mrb[0].mxu0
  %v1455 = vadd.f32 0.0, %v1454
  %v1456 = vpop.f32.mrb[0].mxu0
  %1457 = vmatprep.mubr.bf16.mxu0 %v236
  %1458 = vmatmul.mubr.bf16.gmra.mrb[0].mxu0 %v235
  %v1459 = vpop.f32.mrb[0].mxu0
  %v1460 = vadd.f32 0.0, %v1459
  %v1461 = vpop.f32.mrb[0].mxu0
  %v1462 = vpop.f32.mrb[0].mxu0
  %v1463 = vadd.f32 0.0, %v1462
  %v1464 = vpop.f32.mrb[0].mxu0
  %1465 = vmatprep.mubr.bf16.mxu0 %v238
  %1466 = vmatmul.mubr.bf16.gmra.mrb[0].mxu0 %v237
  %v1467 = vpop.f32.mrb[0].mxu0
  %v1468 = vadd.f32 0.0, %v1467
  %v1469 = vpop.f32.mrb[0].mxu0
  %v1470 = vpop.f32.mrb[0].mxu0
  %v1471 = vadd.f32 0.0, %v1470
  %v1472 = vpop.f32.mrb[0].mxu0
  %1473 = vdwg.mxu0
  %v1474 = vpack.c.bf16 %v1351, %v1348
  %v1475 = vpack.c.bf16 %v1359, %v1356
  %v1476 = vpack.c.bf16 %v1367, %v1364
  %v1477 = vpack.c.bf16 %v1375, %v1372
  %v1478 = vpack.c.bf16 %v1383, %v1380
  %v1479 = vpack.c.bf16 %v1391, %v1388
  %v1480 = vpack.c.bf16 %v1399, %v1396
  %v1481 = vpack.c.bf16 %v1407, %v1404
  %v1482 = vpack.c.bf16 %v1415, %v1412
  %v1483 = vpack.c.bf16 %v1423, %v1420
  %v1484 = vpack.c.bf16 %v1431, %v1428
  %v1485 = vpack.c.bf16 %v1439, %v1436
  %v1486 = vpack.c.bf16 %v1447, %v1444
  %v1487 = vpack.c.bf16 %v1455, %v1452
  %v1488 = vpack.c.bf16 %v1463, %v1460
  %v1489 = vpack.c.bf16 %v1471, %v1468
  %v1491 = vlaneseq
  %v1492 = vshrl.u32 %v1491, 7
  %v1493 = vsub.s32 0, %v1492
  %v1494 = vrot.slane %v1312, %v1493
  %v1512 = vunpack.c.l.b16 %v1296
  %v1513 = vunpack.c.l.b16 %v1297
  %v1514 = vunpack.c.l.b16 %v1298
  %v1515 = vunpack.c.l.b16 %v1299
  %v1516 = vunpack.c.l.b16 %v1300
  %v1517 = vunpack.c.l.b16 %v1301
  %v1518 = vunpack.c.l.b16 %v1302
  %v1519 = vunpack.c.l.b16 %v1303
  %v1520 = vunpack.c.l.b16 %v1304
  %v1521 = vunpack.c.l.b16 %v1305
  %v1522 = vunpack.c.l.b16 %v1306
  %v1523 = vunpack.c.l.b16 %v1307
  %v1524 = vunpack.c.l.b16 %v1308
  %v1525 = vunpack.c.l.b16 %v1309
  %v1526 = vunpack.c.l.b16 %v1310
  %v1527 = vunpack.c.l.b16 %v1311
  %v1528 = vpack.c.b16 %v1513, %v1512
  %v1529 = vpack.c.b16 %v1515, %v1514
  %v1530 = vpack.c.b16 %v1517, %v1516
  %v1531 = vpack.c.b16 %v1519, %v1518
  %v1532 = vpack.c.b16 %v1521, %v1520
  %v1533 = vpack.c.b16 %v1523, %v1522
  %v1534 = vpack.c.b16 %v1525, %v1524
  %v1535 = vpack.c.b16 %v1527, %v1526
  %1544 = vmatprep.subr.bf16.mxu0 0
  %1545 = vmatpush1.bf16.msra.mxu0 %v1528
  %1546 = vmatprep.subr.bf16.mxu0 0
  %1547 = vmatpush1.bf16.msra.mxu0 %v1529
  %1548 = vmatprep.subr.bf16.mxu0 0
  %1549 = vmatpush1.bf16.msra.mxu0 %v1530
  %1550 = vmatprep.subr.bf16.mxu0 0
  %1551 = vmatpush1.bf16.msra.mxu0 %v1531
  %1552 = vmatprep.subr.bf16.mxu0 0
  %1553 = vmatpush1.bf16.msra.mxu0 %v1532
  %1554 = vmatprep.subr.bf16.mxu0 0
  %1555 = vmatpush1.bf16.msra.mxu0 %v1533
  %1556 = vmatprep.subr.bf16.mxu0 0
  %1557 = vmatpush1.bf16.msra.mxu0 %v1534
  %1558 = vmatprep.subr.bf16.mxu0 0
  %1559 = vmatpush1.bf16.msra.mxu0 %v1535
  %1560 = vmatprep.subr.bf16.mxu0 0
  %1561 = vmatpush1.bf16.msra.mxu0 0
  %1562 = vmatprep.subr.bf16.mxu0 0
  %1563 = vmatpush1.bf16.msra.mxu0 0
  %1564 = vmatprep.subr.bf16.mxu0 0
  %1565 = vmatpush1.bf16.msra.mxu0 0
  %1566 = vmatprep.subr.bf16.mxu0 0
  %1567 = vmatpush1.bf16.msra.mxu0 0
  %1568 = vmatprep.subr.bf16.mxu0 0
  %1569 = vmatpush1.bf16.msra.mxu0 0
  %1570 = vmatprep.subr.bf16.mxu0 0
  %1571 = vmatpush1.bf16.msra.mxu0 0
  %1572 = vmatprep.subr.bf16.mxu0 0
  %1573 = vmatpush1.bf16.msra.mxu0 0
  %1574 = vmatprep.subr.bf16.mxu0 0
  %1575 = vmatpush1.bf16.msra.mxu0 0
  %1576 = vmatprep.mubr.bf16.mxu0 0
  %1577 = vmatmul.mubr.bf16.gmra.mrb[0].mxu0 %v1474
  %v1578 = vpop.f32.mrb[0].mxu0
  %v1579 = vadd.f32 %v1494, %v1578
  %v1580 = vpop.f32.mrb[0].mxu0
  %v1581 = vpop.f32.mrb[0].mxu0
  %v1582 = vadd.f32 %v1494, %v1581
  %v1583 = vpop.f32.mrb[0].mxu0
  %1584 = vmatprep.mubr.bf16.mxu0 0
  %1585 = vmatmul.mubr.bf16.gmra.mrb[0].mxu0 %v1475
  %v1586 = vpop.f32.mrb[0].mxu0
  %v1587 = vadd.f32 %v1494, %v1586
  %v1588 = vpop.f32.mrb[0].mxu0
  %v1589 = vpop.f32.mrb[0].mxu0
  %v1590 = vadd.f32 %v1494, %v1589
  %v1591 = vpop.f32.mrb[0].mxu0
  %1592 = vmatprep.mubr.bf16.mxu0 0
  %1593 = vmatmul.mubr.bf16.gmra.mrb[0].mxu0 %v1476
  %v1594 = vpop.f32.mrb[0].mxu0
  %v1595 = vadd.f32 %v1494, %v1594
  %v1596 = vpop.f32.mrb[0].mxu0
  %v1597 = vpop.f32.mrb[0].mxu0
  %v1598 = vadd.f32 %v1494, %v1597
  %v1599 = vpop.f32.mrb[0].mxu0
  %1600 = vmatprep.mubr.bf16.mxu0 0
  %1601 = vmatmul.mubr.bf16.gmra.mrb[0].mxu0 %v1477
  %v1602 = vpop.f32.mrb[0].mxu0
  %v1603 = vadd.f32 %v1494, %v1602
  %v1604 = vpop.f32.mrb[0].mxu0
  %v1605 = vpop.f32.mrb[0].mxu0
  %v1606 = vadd.f32 %v1494, %v1605
  %v1607 = vpop.f32.mrb[0].mxu0
  %1608 = vmatprep.mubr.bf16.mxu0 0
  %1609 = vmatmul.mubr.bf16.gmra.mrb[0].mxu0 %v1478
  %v1610 = vpop.f32.mrb[0].mxu0
  %v1611 = vadd.f32 %v1494, %v1610
  %v1612 = vpop.f32.mrb[0].mxu0
  %v1613 = vpop.f32.mrb[0].mxu0
  %v1614 = vadd.f32 %v1494, %v1613
  %v1615 = vpop.f32.mrb[0].mxu0
  %1616 = vmatprep.mubr.bf16.mxu0 0
  %1617 = vmatmul.mubr.bf16.gmra.mrb[0].mxu0 %v1479
  %v1618 = vpop.f32.mrb[0].mxu0
  %v1619 = vadd.f32 %v1494, %v1618
  %v1620 = vpop.f32.mrb[0].mxu0
  %v1621 = vpop.f32.mrb[0].mxu0
  %v1622 = vadd.f32 %v1494, %v1621
  %v1623 = vpop.f32.mrb[0].mxu0
  %1624 = vmatprep.mubr.bf16.mxu0 0
  %1625 = vmatmul.mubr.bf16.gmra.mrb[0].mxu0 %v1480
  %v1626 = vpop.f32.mrb[0].mxu0
  %v1627 = vadd.f32 %v1494, %v1626
  %v1628 = vpop.f32.mrb[0].mxu0
  %v1629 = vpop.f32.mrb[0].mxu0
  %v1630 = vadd.f32 %v1494, %v1629
  %v1631 = vpop.f32.mrb[0].mxu0
  %1632 = vmatprep.mubr.bf16.mxu0 0
  %1633 = vmatmul.mubr.bf16.gmra.mrb[0].mxu0 %v1481
  %v1634 = vpop.f32.mrb[0].mxu0
  %v1635 = vadd.f32 %v1494, %v1634
  %v1636 = vpop.f32.mrb[0].mxu0
  %v1637 = vpop.f32.mrb[0].mxu0
  %v1638 = vadd.f32 %v1494, %v1637
  %v1639 = vpop.f32.mrb[0].mxu0
  %1640 = vmatprep.mubr.bf16.mxu0 0
  %1641 = vmatmul.mubr.bf16.gmra.mrb[0].mxu0 %v1482
  %v1642 = vpop.f32.mrb[0].mxu0
  %v1643 = vadd.f32 %v1494, %v1642
  %v1644 = vpop.f32.mrb[0].mxu0
  %v1645 = vpop.f32.mrb[0].mxu0
  %v1646 = vadd.f32 %v1494, %v1645
  %v1647 = vpop.f32.mrb[0].mxu0
  %1648 = vmatprep.mubr.bf16.mxu0 0
  %1649 = vmatmul.mubr.bf16.gmra.mrb[0].mxu0 %v1483
  %v1650 = vpop.f32.mrb[0].mxu0
  %v1651 = vadd.f32 %v1494, %v1650
  %v1652 = vpop.f32.mrb[0].mxu0
  %v1653 = vpop.f32.mrb[0].mxu0
  %v1654 = vadd.f32 %v1494, %v1653
  %v1655 = vpop.f32.mrb[0].mxu0
  %1656 = vmatprep.mubr.bf16.mxu0 0
  %1657 = vmatmul.mubr.bf16.gmra.mrb[0].mxu0 %v1484
  %v1658 = vpop.f32.mrb[0].mxu0
  %v1659 = vadd.f32 %v1494, %v1658
  %v1660 = vpop.f32.mrb[0].mxu0
  %v1661 = vpop.f32.mrb[0].mxu0
  %v1662 = vadd.f32 %v1494, %v1661
  %v1663 = vpop.f32.mrb[0].mxu0
  %1664 = vmatprep.mubr.bf16.mxu0 0
  %1665 = vmatmul.mubr.bf16.gmra.mrb[0].mxu0 %v1485
  %v1666 = vpop.f32.mrb[0].mxu0
  %v1667 = vadd.f32 %v1494, %v1666
  %v1668 = vpop.f32.mrb[0].mxu0
  %v1669 = vpop.f32.mrb[0].mxu0
  %v1670 = vadd.f32 %v1494, %v1669
  %v1671 = vpop.f32.mrb[0].mxu0
  %1672 = vmatprep.mubr.bf16.mxu0 0
  %1673 = vmatmul.mubr.bf16.gmra.mrb[0].mxu0 %v1486
  %v1674 = vpop.f32.mrb[0].mxu0
  %v1675 = vadd.f32 %v1494, %v1674
  %v1676 = vpop.f32.mrb[0].mxu0
  %v1677 = vpop.f32.mrb[0].mxu0
  %v1678 = vadd.f32 %v1494, %v1677
  %v1679 = vpop.f32.mrb[0].mxu0
  %1680 = vmatprep.mubr.bf16.mxu0 0
  %1681 = vmatmul.mubr.bf16.gmra.mrb[0].mxu0 %v1487
  %v1682 = vpop.f32.mrb[0].mxu0
  %v1683 = vadd.f32 %v1494, %v1682
  %v1684 = vpop.f32.mrb[0].mxu0
  %v1685 = vpop.f32.mrb[0].mxu0
  %v1686 = vadd.f32 %v1494, %v1685
  %v1687 = vpop.f32.mrb[0].mxu0
  %1688 = vmatprep.mubr.bf16.mxu0 0
  %1689 = vmatmul.mubr.bf16.gmra.mrb[0].mxu0 %v1488
  %v1690 = vpop.f32.mrb[0].mxu0
  %v1691 = vadd.f32 %v1494, %v1690
  %v1692 = vpop.f32.mrb[0].mxu0
  %v1693 = vpop.f32.mrb[0].mxu0
  %v1694 = vadd.f32 %v1494, %v1693
  %v1695 = vpop.f32.mrb[0].mxu0
  %1696 = vmatprep.mubr.bf16.mxu0 0
  %1697 = vmatmul.mubr.bf16.gmra.mrb[0].mxu0 %v1489
  %v1698 = vpop.f32.mrb[0].mxu0
  %v1699 = vadd.f32 %v1494, %v1698
  %v1700 = vpop.f32.mrb[0].mxu0
  %v1701 = vpop.f32.mrb[0].mxu0
  %v1702 = vadd.f32 %v1494, %v1701
  %v1703 = vpop.f32.mrb[0].mxu0
  %1704 = vdwg.mxu0
  %v1705 = vmax.f32 %v1579, 0.0
  %v1706 = vmax.f32 %v1582, 0.0
  %v1707 = vmax.f32 %v1587, 0.0
  %v1708 = vmax.f32 %v1590, 0.0
  %v1709 = vmax.f32 %v1595, 0.0
  %v1710 = vmax.f32 %v1598, 0.0
  %v1711 = vmax.f32 %v1603, 0.0
  %v1712 = vmax.f32 %v1606, 0.0
  %v1713 = vmax.f32 %v1611, 0.0
  %v1714 = vmax.f32 %v1614, 0.0
  %v1715 = vmax.f32 %v1619, 0.0
  %v1716 = vmax.f32 %v1622, 0.0
  %v1717 = vmax.f32 %v1627, 0.0
  %v1718 = vmax.f32 %v1630, 0.0
  %v1719 = vmax.f32 %v1635, 0.0
  %v1720 = vmax.f32 %v1638, 0.0
  %v1721 = vmax.f32 %v1643, 0.0
  %v1722 = vmax.f32 %v1646, 0.0
  %v1723 = vmax.f32 %v1651, 0.0
  %v1724 = vmax.f32 %v1654, 0.0
  %v1725 = vmax.f32 %v1659, 0.0
  %v1726 = vmax.f32 %v1662, 0.0
  %v1727 = vmax.f32 %v1667, 0.0
  %v1728 = vmax.f32 %v1670, 0.0
  %v1729 = vmax.f32 %v1675, 0.0
  %v1730 = vmax.f32 %v1678, 0.0
  %v1731 = vmax.f32 %v1683, 0.0
  %v1732 = vmax.f32 %v1686, 0.0
  %v1733 = vmax.f32 %v1691, 0.0
  %v1734 = vmax.f32 %v1694, 0.0
  %v1735 = vmax.f32 %v1699, 0.0
  %v1736 = vmax.f32 %v1702, 0.0
  %v1737 = vmax.f32 %v1248, %v1705
  %v1738 = vmax.f32 %v1249, %v1706
  %v1739 = vmax.f32 %v1250, %v1707
  %v1740 = vmax.f32 %v1251, %v1708
  %v1741 = vmax.f32 %v1252, %v1709
  %v1742 = vmax.f32 %v1253, %v1710
  %v1743 = vmax.f32 %v1254, %v1711
  %v1744 = vmax.f32 %v1255, %v1712
  %v1745 = vmax.f32 %v1256, %v1713
  %v1746 = vmax.f32 %v1257, %v1714
  %v1747 = vmax.f32 %v1258, %v1715
  %v1748 = vmax.f32 %v1259, %v1716
  %v1749 = vmax.f32 %v1260, %v1717
  %v1750 = vmax.f32 %v1261, %v1718
  %v1751 = vmax.f32 %v1262, %v1719
  %v1752 = vmax.f32 %v1263, %v1720
  %v1753 = vmax.f32 %v1264, %v1721
  %v1754 = vmax.f32 %v1265, %v1722
  %v1755 = vmax.f32 %v1266, %v1723
  %v1756 = vmax.f32 %v1267, %v1724
  %v1757 = vmax.f32 %v1268, %v1725
  %v1758 = vmax.f32 %v1269, %v1726
  %v1759 = vmax.f32 %v1270, %v1727
  %v1760 = vmax.f32 %v1271, %v1728
  %v1761 = vmax.f32 %v1272, %v1729
  %v1762 = vmax.f32 %v1273, %v1730
  %v1763 = vmax.f32 %v1274, %v1731
  %v1764 = vmax.f32 %v1275, %v1732
  %v1765 = vmax.f32 %v1276, %v1733
  %v1766 = vmax.f32 %v1277, %v1734
  %v1767 = vmax.f32 %v1278, %v1735
  %v1768 = vmax.f32 %v1279, %v1736
  %1769 = vst [vmem:[%s8] sm:$0xff] %v1737
  %1770 = vst [vmem:[%s8 + $0x8] sm:$0xff] %v1738
  %1771 = vst [vmem:[%s8 + $0x10] sm:$0xff] %v1739
  %1772 = vst [vmem:[%s8 + $0x18] sm:$0xff] %v1740
  %1773 = vst [vmem:[%s8 + $0x20] sm:$0xff] %v1741
  %1774 = vst [vmem:[%s8 + $0x28] sm:$0xff] %v1742
  %1775 = vst [vmem:[%s8 + $0x30] sm:$0xff] %v1743
  %1776 = vst [vmem:[%s8 + $0x38] sm:$0xff] %v1744
  %1777 = vst [vmem:[%s8 + $0x40] sm:$0xff] %v1745
  %1778 = vst [vmem:[%s8 + $0x48] sm:$0xff] %v1746
  %1779 = vst [vmem:[%s8 + $0x50] sm:$0xff] %v1747
  %1780 = vst [vmem:[%s8 + $0x58] sm:$0xff] %v1748
  %1781 = vst [vmem:[%s8 + $0x60] sm:$0xff] %v1749
  %1782 = vst [vmem:[%s8 + $0x68] sm:$0xff] %v1750
  %1783 = vst [vmem:[%s8 + $0x70] sm:$0xff] %v1751
  %1784 = vst [vmem:[%s8 + $0x78] sm:$0xff] %v1752
  %1785 = vst [vmem:[%s8 + $0x80] sm:$0xff] %v1753
  %1786 = vst [vmem:[%s8 + $0x88] sm:$0xff] %v1754
  %1787 = vst [vmem:[%s8 + $0x90] sm:$0xff] %v1755
  %1788 = vst [vmem:[%s8 + $0x98] sm:$0xff] %v1756
  %1789 = vst [vmem:[%s8 + $0xa0] sm:$0xff] %v1757
  %1790 = vst [vmem:[%s8 + $0xa8] sm:$0xff] %v1758
  %1791 = vst [vmem:[%s8 + $0xb0] sm:$0xff] %v1759
  %1792 = vst [vmem:[%s8 + $0xb8] sm:$0xff] %v1760
  %1793 = vst [vmem:[%s8 + $0xc0] sm:$0xff] %v1761
  %1794 = vst [vmem:[%s8 + $0xc8] sm:$0xff] %v1762
  %1795 = vst [vmem:[%s8 + $0xd0] sm:$0xff] %v1763
  %1796 = vst [vmem:[%s8 + $0xd8] sm:$0xff] %v1764
  %1797 = vst [vmem:[%s8 + $0xe0] sm:$0xff] %v1765
  %1798 = vst [vmem:[%s8 + $0xe8] sm:$0xff] %v1766
  %1799 = vst [vmem:[%s8 + $0xf0] sm:$0xff] %v1767
  %1800 = vst [vmem:[%s8 + $0xf8] sm:$0xff] %v1768
  // Predicated region
  $region34: #{jk_cflp_forward.1} parent=0 // pred_check
    _
  $region35: #{jk_cflp_forward.1} parent=0 // pred_check_branch
    %1802 = sbr.rel (0) target = $region37
  $region36: #{jk_cflp_forward.1} parent=0 // pred_region
    _
  $region37: #{jk_cflp_forward.1} parent=0 // pred_fallthru
    _
  // Predicated region
  $region38: #{jk_cflp_forward.1} parent=0 // pred_check
    _
  $region39: #{jk_cflp_forward.1} parent=0 // pred_check_branch
    %1804 = sbr.rel (0) target = $region41
  $region40: #{jk_cflp_forward.1} parent=0 // pred_region
    _
  $region41: #{jk_cflp_forward.1} parent=0 // pred_fallthru
    _

</llo_original>
